<compile_context>
chip_gen: v6e
topology: v6e:2x2x1
jax: 0.10.0
libtpu: 0.0.40
codegen_flags: <defaults>
</compile_context>

<pallas_src>
import jax
import jax.numpy as jnp
import numpy as np
from jax.experimental import pallas as pl
from jax.experimental.pallas import tpu as pltpu

WPAD = 256   # lane width of every packed weight / bias block (>= 6*rnn_dim)
KGL = 128    # lane width of the (padded, lane-dense) per-frame kg output


def _round_up(x, m):
    return (x + m - 1) // m * m


# ----------------------------------------------------------------------------
# Parameter init (deterministic, synthetic) — mirrors the PyTorch module
# ----------------------------------------------------------------------------
def init_params(key, L, fc_dim, rnn_layers, rnn_dim):
    Din = 2 * L + 1
    ks = iter(jax.random.split(key, 64))

    def w(shape, scale=0.2):
        return (scale * jax.random.normal(next(ks), shape)).astype(jnp.float32)

    p = {}
    p["Wr_in"] = w((Din, fc_dim))
    p["Wi_in"] = w((Din, fc_dim))
    p["br_in"] = w((1, fc_dim))
    p["bi_in"] = w((1, fc_dim))
    p["a_in"] = jnp.full((1, 1), 0.25, jnp.float32)        # PReLU default init
    p["gru"] = []
    for l in range(rnn_layers):
        in_dim = fc_dim if l == 0 else rnn_dim
        layer = {}
        for name in ("r", "i"):
            layer[name] = dict(
                Wih=w((in_dim, 3 * rnn_dim)),
                Whh=w((rnn_dim, 3 * rnn_dim)),
                bih=w((1, 3 * rnn_dim)),
                bhh=w((1, 3 * rnn_dim)),
            )
        p["gru"].append(layer)
    p["W1r"] = w((rnn_dim, fc_dim))
    p["W1i"] = w((rnn_dim, fc_dim))
    p["b1r"] = w((1, fc_dim))
    p["b1i"] = w((1, fc_dim))
    p["a_out"] = jnp.full((1, 1), 0.25, jnp.float32)
    p["W2r"] = w((fc_dim, L))
    p["W2i"] = w((fc_dim, L))
    p["b2r"] = w((1, L))
    p["b2i"] = w((1, L))
    return p


# ----------------------------------------------------------------------------
# Host-side one-time packing of all parameters into 2 contiguous buffers.
# GRU weights of the r/i streams are fused block-diagonally with a
# gate-interleaved column layout: [r_r r_i | z_r z_i | n_r n_i]  (6H lanes).
# ----------------------------------------------------------------------------
def pack_params(params, L, fc_dim, rnn_layers, rnn_dim):
    fc, H = fc_dim, rnn_dim
    assert fc % 8 == 0 and H % 8 == 0, "fc_dim / rnn_dim must be multiples of 8"
    assert 6 * H <= WPAD and 2 * fc <= WPAD and 2 * L <= KGL, "increase WPAD/KGL"

    def fuse_w(Wr, Wi):
        rows = Wr.shape[0]
        out = jnp.zeros((2 * rows, 6 * H), jnp.float32)
        for g in range(3):                                   # g: 0=r, 1=z, 2=n
            out = out.at[:rows, (2 * g) * H:(2 * g + 1) * H].set(Wr[:, g * H:(g + 1) * H])
            out = out.at[rows:, (2 * g + 1) * H:(2 * g + 2) * H].set(Wi[:, g * H:(g + 1) * H])
        return out

    def fuse_b(br, bi):
        out = jnp.zeros((1, 6 * H), jnp.float32)
        for g in range(3):
            out = out.at[:, (2 * g) * H:(2 * g + 1) * H].set(br[:, g * H:(g + 1) * H])
            out = out.at[:, (2 * g + 1) * H:(2 * g + 2) * H].set(bi[:, g * H:(g + 1) * H])
        return out

    w_entries = [("Win", jnp.concatenate([params["Wr_in"], params["Wi_in"]], axis=1))]
    for l in range(rnn_layers):
        gr, gi = params["gru"][l]["r"], params["gru"][l]["i"]
        w_entries.append((f"Wih{l}", fuse_w(gr["Wih"], gi["Wih"])))
        w_entries.append((f"Whh{l}", fuse_w(gr["Whh"], gi["Whh"])))
    w_entries.append(("W1", jnp.concatenate([params["W1r"], params["W1i"]], axis=1)))
    w_entries.append(("W2", jnp.concatenate([params["W2r"], params["W2i"]], axis=1)))

    w_layout, blocks, row = {}, [], 0
    for name, mat in w_entries:
        mat = jnp.asarray(mat, jnp.float32)
        r, c = mat.shape
        assert c <= WPAD
        rp = _round_up(r, 8)
        blocks.append(jnp.zeros((rp, WPAD), jnp.float32).at[:r, :c].set(mat))
        w_layout[name] = (row, rp)                           # full padded block
        row += rp
    Wbuf = jnp.concatenate(blocks, axis=0)

    b_entries = [("b_in", jnp.concatenate([params["br_in"], params["bi_in"]], axis=1))]
    for l in range(rnn_layers):
        gr, gi = params["gru"][l]["r"], params["gru"][l]["i"]
        b_entries.append((f"bih{l}", fuse_b(gr["bih"], gi["bih"])))
        b_entries.append((f"bhh{l}", fuse_b(gr["bhh"], gi["bhh"])))
    b_entries.append(("b1", jnp.concatenate([params["b1r"], params["b1i"]], axis=1)))
    b_entries.append(("b2", jnp.concatenate([params["b2r"], params["b2i"]], axis=1)))

    b_layout = {}
    bbuf = jnp.zeros((_round_up(len(b_entries), 8), WPAD), jnp.float32)
    for i, (name, vec) in enumerate(b_entries):
        vec = jnp.asarray(vec, jnp.float32)
        c = vec.shape[1]
        assert c <= WPAD
        bbuf = bbuf.at[i, :c].set(vec[0])
        b_layout[name] = i

    alphas = jnp.array([params["a_in"][0, 0], params["a_out"][0, 0]], jnp.float32)
    return Wbuf, bbuf, alphas, dict(w=w_layout, b=b_layout)


# ----------------------------------------------------------------------------
# Hidden-state packing:  dict of 4 x (layers,B,H)  <->  (layers, 2B, 2H)
#   lanes [:H] = gru_r stack [h_rr ; h_ir],  lanes [H:] = gru_i stack [h_ri ; h_ii]
# ----------------------------------------------------------------------------
def pack_hidden(hidden):
    h_r = jnp.concatenate([hidden["rr"], hidden["ir"]], axis=1)
    h_i = jnp.concatenate([hidden["ri"], hidden["ii"]], axis=1)
    return jnp.concatenate([h_r, h_i], axis=2)


def unpack_hidden(h_packed, B, H):
    return {"rr": h_packed[:, :B, :H], "ir": h_packed[:, B:, :H],
            "ri": h_packed[:, :B, H:], "ii": h_packed[:, B:, H:]}


# ----------------------------------------------------------------------------
# Pallas kernel: one grid step == one time frame; hidden lives in VMEM scratch.
# ----------------------------------------------------------------------------
def _make_kgnet_kernel(B, L, fc, H, rnn_layers, w_layout, b_layout):
    twoB = 2 * B

    def kernel(x_ref, h0_ref, w_ref, b_ref, alpha_ref, kg_ref, hout_ref, h_vmem):
        t = pl.program_id(0)
        n_t = pl.num_programs(0)

        @pl.when(t == 0)
        def _init():
            h_vmem[...] = h0_ref[...]          # bring hidden in once per call

        def wblk(name):                        # full zero-padded block (8k x 256)
            r0, rp = w_layout[name]
            return w_ref[r0:r0 + rp, :]

        def brow(name):
            i = b_layout[name]
            return b_ref[i:i + 1, :]

        def dense(lhs, name_w, name_b):
            return (jnp.dot(lhs, wblk(name_w), preferred_element_type=jnp.float32)
                    + brow(name_b))

        a_in = alpha_ref[0]                    # SMEM scalars
        a_out = alpha_ref[1]
        row_real = jax.lax.broadcasted_iota(jnp.int32, (twoB, 1), 0) < B

        # ---- fc_in: [xr ; xi] @ [Wr | Wi]; pick real/imag half per row ----
        pre = dense(x_ref[0], "Win", "b_in")                         # (2B, WPAD)
        feat = jnp.where(row_real, pre[:, :fc], pre[:, fc:2 * fc])   # (2B, fc)
        feat = jnp.where(feat >= 0.0, feat, a_in * feat)             # PReLU

        # ---- ComplexGRU: r/i streams fused per layer (2 matmuls / layer) ----
        cur = jnp.concatenate([feat, feat], axis=1)                  # (2B, 2fc)
        for l in range(rnn_layers):
            h_prev = h_vmem[l]                                       # (2B, 2H)
            gi = dense(cur, f"Wih{l}", f"bih{l}")                    # (2B, WPAD)
            gh = dense(h_prev, f"Whh{l}", f"bhh{l}")
            rz = jax.nn.sigmoid(gi[:, :4 * H] + gh[:, :4 * H])       # [r_r r_i z_r z_i]
            r2 = rz[:, :2 * H]
            z2 = rz[:, 2 * H:4 * H]
            n2 = jnp.tanh(gi[:, 4 * H:6 * H] + r2 * gh[:, 4 * H:6 * H])
            h_new = (1.0 - z2) * n2 + z2 * h_prev                    # (2B, 2H)
            h_vmem[l] = h_new
            cur = h_new                        # next layer's fused [in_r | in_i]

        # ---- complex combine: y_real = Frr - Fii, y_imag = Fir + Fri ----
        cur_r = cur[:, :H]                     # rows: [Frr ; Fir]
        cur_i = cur[:, H:2 * H]                # rows: [Fri ; Fii]
        rolled_i = pltpu.roll(cur_i, shift=B, axis=0)                # [Fii ; Fri]
        y = jnp.where(row_real, cur_r - rolled_i, cur_r + rolled_i)  # (2B, H)

        # ---- fc_out: Dense -> PReLU -> Dense ----
        pre1 = dense(y, "W1", "b1")
        tfe = jnp.where(row_real, pre1[:, :fc], pre1[:, fc:2 * fc])
        tfe = jnp.where(tfe >= 0.0, tfe, a_out * tfe)
        pre2 = dense(tfe, "W2", "b2")                                # (2B, WPAD)
        kg_ref[0] = pre2[:, :KGL]              # lane-dense padded store; wrapper
                                               # picks lanes [0:L] / [L:2L]

        @pl.when(t == n_t - 1)
        def _finish():
            hout_ref[...] = h_vmem[...]        # emit hidden only once, at the end

    return kernel


# ----------------------------------------------------------------------------
# Wrapper: processes a whole chunk of T frames in one pallas_call.
#   xr_seq, xi_seq : (T, B, 2L+1)   real / imag parts of the input features
#   h_packed       : (rnn_layers, 2B, 2H)
# Returns kg of shape (T, B, L, 1) complex64 and the new packed hidden state.
# ----------------------------------------------------------------------------
def kgnet_forward_seq(xr_seq, xi_seq, h_packed, packed, L, fc_dim, rnn_layers, rnn_dim):
    Wbuf, bbuf, alphas, layout = packed
    T, B, Din = xr_seq.shape
    H = rnn_dim
    twoB = 2 * B
    Dpad = _round_up(Din, 8)                   # K of the fc_in matmul (zero padded)

    x_all = (jnp.zeros((T, twoB, Dpad), jnp.float32)
             .at[:, :B, :Din].set(xr_seq)
             .at[:, B:, :Din].set(xi_seq))

    kernel = _make_kgnet_kernel(B, L, fc_dim, H, rnn_layers, layout["w"], layout["b"])

    flops = int(2 * T * twoB * Wbuf.shape[0] * WPAD)
    transcendentals = int(T * twoB * rnn_layers * 6 * H)
    bytes_accessed = int(4 * (Wbuf.size + bbuf.size + x_all.size
                              + T * twoB * KGL + 2 * h_packed.size))

    kg_all, h_out = pl.pallas_call(
        kernel,
        out_shape=(
            jax.ShapeDtypeStruct((T, twoB, KGL), jnp.float32),            # padded kg
            jax.ShapeDtypeStruct((rnn_layers, twoB, 2 * H), jnp.float32), # final hidden
        ),
        grid=(T,),
        in_specs=[
            pl.BlockSpec((1, twoB, Dpad), lambda t: (t, 0, 0)),           # frame t
            pl.BlockSpec((rnn_layers, twoB, 2 * H), lambda t: (0, 0, 0)), # h0 (resident)
            pl.BlockSpec(Wbuf.shape, lambda t: (0, 0)),                   # weights resident
            pl.BlockSpec(bbuf.shape, lambda t: (0, 0)),                   # biases resident
            pl.BlockSpec(memory_space=pltpu.MemorySpace.SMEM),            # PReLU alphas
        ],
        out_specs=(
            pl.BlockSpec((1, twoB, KGL), lambda t: (t, 0, 0)),            # lane-dense store
            pl.BlockSpec((rnn_layers, twoB, 2 * H), lambda t: (0, 0, 0)),
        ),
        scratch_shapes=[pltpu.VMEM((rnn_layers, twoB, 2 * H), jnp.float32)],
        compiler_params=pltpu.CompilerParams(dimension_semantics=("arbitrary",)),
        cost_estimate=pl.CostEstimate(flops=flops, transcendentals=transcendentals,
                                      bytes_accessed=bytes_accessed),
    )(x_all, h_packed, Wbuf, bbuf, alphas)

    # kg = fc_out(rnn_out).permute(0, 2, 1) per frame  ->  (T, B, L, 1) complex
    kg = (kg_all[:, :B, :L] + 1j * kg_all[:, B:, L:2 * L])[:, :, :, None]
    return kg, h_out


# ----------------------------------------------------------------------------
# Pure-JAX per-frame reference for correctness check
# ----------------------------------------------------------------------------
def ref_forward(xr, xi, hidden, params, L, fc_dim, rnn_layers, rnn_dim):
    H = rnn_dim
    prelu = lambda x, a: jnp.where(x >= 0, x, a * x)
    dense = lambda x, W, b: x @ W + b

    def gru_step(x, h, Wih, Whh, bih, bhh):
        gi = x @ Wih + bih
        gh = h @ Whh + bhh
        r = jax.nn.sigmoid(gi[:, :H] + gh[:, :H])
        z = jax.nn.sigmoid(gi[:, H:2 * H] + gh[:, H:2 * H])
        n = jnp.tanh(gi[:, 2 * H:] + r * gh[:, 2 * H:])
        return (1 - z) * n + z * h

    feat_r = prelu(dense(xr, params["Wr_in"], params["br_in"]), params["a_in"])
    feat_i = prelu(dense(xi, params["Wi_in"], params["bi_in"]), params["a_in"])
    cur = {"rr": feat_r, "ir": feat_i, "ri": feat_r, "ii": feat_i}
    wkey = {"rr": "r", "ir": "r", "ri": "i", "ii": "i"}
    new_hidden = {s: [] for s in cur}
    for l in range(rnn_layers):
        for s in ("rr", "ir", "ri", "ii"):
            g = params["gru"][l][wkey[s]]
            h_new = gru_step(cur[s], hidden[s][l], g["Wih"], g["Whh"],
                             g["bih"], g["bhh"])
            new_hidden[s].append(h_new)
            cur[s] = h_new
    new_hidden = {s: jnp.stack(v) for s, v in new_hidden.items()}
    y_r = cur["rr"] - cur["ii"]
    y_i = cur["ri"] + cur["ir"]
    t_r = prelu(dense(y_r, params["W1r"], params["b1r"]), params["a_out"])
    t_i = prelu(dense(y_i, params["W1i"], params["b1i"]), params["a_out"])
    kg_r = dense(t_r, params["W2r"], params["b2r"])
    kg_i = dense(t_i, params["W2i"], params["b2i"])
    return (kg_r + 1j * kg_i)[:, :, None], new_hidden


if __name__ == "__main__":
    B, L, fc_dim, rnn_layers, rnn_dim = 4, 4, 16, 2, 32
    T = 8                                                   # frames per kernel call
    key = jax.random.PRNGKey(0)
    k_p, k_x1, k_x2 = jax.random.split(key, 3)

    params = init_params(k_p, L, fc_dim, rnn_layers, rnn_dim)
    packed = pack_params(params, L, fc_dim, rnn_layers, rnn_dim)

    Din = 2 * L + 1
    x1 = jax.random.normal(k_x1, (2, T, B, Din), jnp.float32)   # [real, imag]
    x2 = jax.random.normal(k_x2, (2, T, B, Din), jnp.float32)

    hidden0 = {s: jnp.zeros((rnn_layers, B, rnn_dim), jnp.float32)
               for s in ("rr", "ir", "ri", "ii")}

    # --- kernel: two streaming chunks of T frames, hidden carried across calls ---
    h_packed = pack_hidden(hidden0)
    kg1, h_packed = kgnet_forward_seq(x1[0], x1[1], h_packed, packed,
                                      L, fc_dim, rnn_layers, rnn_dim)
    kg2, h_packed = kgnet_forward_seq(x2[0], x2[1], h_packed, packed,
                                      L, fc_dim, rnn_layers, rnn_dim)
    jax.block_until_ready((kg1, kg2, h_packed))

    # --- per-frame reference ---
    hid = hidden0
    kg1_ref, kg2_ref = [], []
    for t in range(T):
        kg_t, hid = ref_forward(x1[0][t], x1[1][t], hid, params,
                                L, fc_dim, rnn_layers, rnn_dim)
        kg1_ref.append(kg_t)
    for t in range(T):
        kg_t, hid = ref_forward(x2[0][t], x2[1][t], hid, params,
                                L, fc_dim, rnn_layers, rnn_dim)
        kg2_ref.append(kg_t)
    kg1_ref = jnp.stack(kg1_ref)
    kg2_ref = jnp.stack(kg2_ref)

    np.testing.assert_allclose(np.asarray(kg1), np.asarray(kg1_ref),
                               rtol=1e-4, atol=1e-4)
    np.testing.assert_allclose(np.asarray(kg2), np.asarray(kg2_ref),
                               rtol=1e-4, atol=1e-4)
    h_unpacked = unpack_hidden(h_packed, B, rnn_dim)
    for s in ("rr", "ir", "ri", "ii"):
        np.testing.assert_allclose(np.asarray(h_unpacked[s]),
                                   np.asarray(hid[s]), rtol=1e-4, atol=1e-4)
    assert kg1.shape == (T, B, L, 1) and kg2.shape == (T, B, L, 1)
    print("KERNEL_OK")
</pallas_src>

<mosaic_0001>
module attributes {stable_mosaic.version = 11 : i64} {
  func.func @kernel(%arg0: i32, %arg1: memref<1x8x16xf32, #tpu.memory_space<vmem>>, %arg2: memref<2x8x64xf32, #tpu.memory_space<vmem>>, %arg3: memref<288x256xf32, #tpu.memory_space<vmem>>, %arg4: memref<8x256xf32, #tpu.memory_space<vmem>>, %arg5: memref<2xf32, #tpu.memory_space<smem>>, %arg6: memref<1x8x128xf32, #tpu.memory_space<vmem>>, %arg7: memref<2x8x64xf32, #tpu.memory_space<vmem>>, %arg8: memref<2x8x64xf32, #tpu.memory_space<vmem>>) attributes {dimension_semantics = [#tpu.dimension_semantics<arbitrary>], iteration_bounds = array<i64: 8>, scalar_prefetch = 0 : i64, scratch_operands = 1 : i64, tpu.core_type = #tpu.core_type<tc>, window_params = [{transform_indices = @transform_0, window_bounds = array<i64: 1, 8, 16>}, {pipeline_mode = #tpu.pipeline_mode<synchronous>, transform_indices = @transform_1, window_bounds = array<i64: 2, 8, 64>}, {pipeline_mode = #tpu.pipeline_mode<synchronous>, transform_indices = @transform_2, window_bounds = array<i64: 288, 256>}, {pipeline_mode = #tpu.pipeline_mode<synchronous>, transform_indices = @transform_3, window_bounds = array<i64: 8, 256>}, {transform_indices = @transform_4, window_bounds = array<i64: 2>}, {transform_indices = @transform_5, window_bounds = array<i64: 1, 8, 128>}, {pipeline_mode = #tpu.pipeline_mode<synchronous>, transform_indices = @transform_6, window_bounds = array<i64: 2, 8, 64>}]} {
    %c0_i32 = arith.constant 0 : i32
    %0 = arith.cmpi eq, %arg0, %c0_i32 : i32
    %1 = arith.extui %0 : i1 to i32
    %c0_i32_0 = arith.constant 0 : i32
    %2 = arith.cmpi ne, %1, %c0_i32_0 : i32
    scf.if %2 {
      %c0_50 = arith.constant 0 : index
      %c0_51 = arith.constant 0 : index
      %c0_52 = arith.constant 0 : index
      %131 = vector.load %arg2[%c0_50, %c0_51, %c0_52] : memref<2x8x64xf32, #tpu.memory_space<vmem>>, vector<2x8x64xf32>
      %c0_53 = arith.constant 0 : index
      %c0_54 = arith.constant 0 : index
      %c0_55 = arith.constant 0 : index
      %132 = vector.load %arg8[%c0_53, %c0_54, %c0_55] : memref<2x8x64xf32, #tpu.memory_space<vmem>>, vector<2x8x64xf32>
      tpu.vector_store %arg8[%c0_53, %c0_54, %c0_55], %131 {strides = array<i32>} : memref<2x8x64xf32, #tpu.memory_space<vmem>>, vector<2x8x64xf32>,
    } else {
    }
    %c0 = arith.constant 0 : index
    %3 = memref.load %arg5[%c0] : memref<2xf32, #tpu.memory_space<smem>>
    %c1 = arith.constant 1 : index
    %4 = memref.load %arg5[%c1] : memref<2xf32, #tpu.memory_space<smem>>
    %5 = tpu.iota {dimensions = array<i32: 0>} : vector<8x1xi32>
    %c4_i32 = arith.constant 4 : i32
    %6 = vector.broadcast %c4_i32 : i32 to vector<8x1xi32>
    %7 = arith.cmpi slt, %5, %6 : vector<8x1xi32>
    %c0_1 = arith.constant 0 : index
    %c0_2 = arith.constant 0 : index
    %c0_3 = arith.constant 0 : index
    %8 = vector.load %arg1[%c0_1, %c0_2, %c0_3] : memref<1x8x16xf32, #tpu.memory_space<vmem>>, vector<1x8x16xf32>
    %9 = vector.shape_cast %8 : vector<1x8x16xf32> to vector<8x16xf32>
    %c0_4 = arith.constant 0 : index
    %c0_5 = arith.constant 0 : index
    %10 = vector.load %arg3[%c0_4, %c0_5] : memref<288x256xf32, #tpu.memory_space<vmem>>, vector<16x256xf32>
    %cst = arith.constant dense<0.000000e+00> : vector<8x256xf32>
    %11 = tpu.matmul %9, %10, %cst {dimension_numbers = #tpu.dot_dimension_numbers<[1], [0], [0], [1], [0, 0, 1, 1], [], []>} : vector<8x16xf32>, vector<16x256xf32>, vector<8x256xf32> -> vector<8x256xf32>
    %c0_6 = arith.constant 0 : index
    %c0_7 = arith.constant 0 : index
    %12 = vector.load %arg4[%c0_6, %c0_7] : memref<8x256xf32, #tpu.memory_space<vmem>>, vector<1x256xf32>
    %13 = vector.broadcast %12 : vector<1x256xf32> to vector<8x256xf32>
    %14 = arith.addf %11, %13 : vector<8x256xf32>
    %15 = vector.extract_strided_slice %14 {offsets = [0, 0], sizes = [8, 16], strides = [1, 1]} : vector<8x256xf32> to vector<8x16xf32>
    %16 = vector.extract_strided_slice %14 {offsets = [0, 16], sizes = [8, 16], strides = [1, 1]} : vector<8x256xf32> to vector<8x16xf32>
    %17 = vector.shape_cast %7 : vector<8x1xi1> to vector<8x1xi1>
    %18 = vector.broadcast %17 : vector<8x1xi1> to vector<8x16xi1>
    %19 = arith.select %18, %15, %16 : vector<8x16xi1>, vector<8x16xf32>
    %cst_8 = arith.constant 0.000000e+00 : f32
    %20 = vector.broadcast %cst_8 : f32 to vector<8x16xf32>
    %21 = arith.cmpf oge, %19, %20 : vector<8x16xf32>
    %22 = vector.broadcast %3 : f32 to vector<8x16xf32>
    %23 = arith.mulf %22, %19 : vector<8x16xf32>
    %24 = arith.select %21, %19, %23 : vector<8x16xi1>, vector<8x16xf32>
    %25 = tpu.concatenate %24, %24 in 1 : vector<8x16xf32>, vector<8x16xf32> -> vector<8x32xf32>
    %c0_9 = arith.constant 0 : index
    %c0_10 = arith.constant 0 : index
    %c0_11 = arith.constant 0 : index
    %26 = vector.load %arg8[%c0_9, %c0_10, %c0_11] : memref<2x8x64xf32, #tpu.memory_space<vmem>>, vector<1x8x64xf32>
    %27 = vector.shape_cast %26 : vector<1x8x64xf32> to vector<8x64xf32>
    %c16 = arith.constant 16 : index
    %c0_12 = arith.constant 0 : index
    %28 = vector.load %arg3[%c16, %c0_12] : memref<288x256xf32, #tpu.memory_space<vmem>>, vector<32x256xf32>
    %cst_13 = arith.constant dense<0.000000e+00> : vector<8x256xf32>
    %29 = tpu.matmul %25, %28, %cst_13 {dimension_numbers = #tpu.dot_dimension_numbers<[1], [0], [0], [1], [0, 0, 1, 1], [], []>} : vector<8x32xf32>, vector<32x256xf32>, vector<8x256xf32> -> vector<8x256xf32>
    %c1_14 = arith.constant 1 : index
    %c0_15 = arith.constant 0 : index
    %30 = vector.load %arg4[%c1_14, %c0_15] : memref<8x256xf32, #tpu.memory_space<vmem>>, vector<1x256xf32>
    %31 = vector.broadcast %30 : vector<1x256xf32> to vector<8x256xf32>
    %32 = arith.addf %29, %31 : vector<8x256xf32>
    %c48 = arith.constant 48 : index
    %c0_16 = arith.constant 0 : index
    %33 = vector.load %arg3[%c48, %c0_16] : memref<288x256xf32, #tpu.memory_space<vmem>>, vector<64x256xf32>
    %cst_17 = arith.constant dense<0.000000e+00> : vector<8x256xf32>
    %34 = tpu.matmul %27, %33, %cst_17 {dimension_numbers = #tpu.dot_dimension_numbers<[1], [0], [0], [1], [0, 0, 1, 1], [], []>} : vector<8x64xf32>, vector<64x256xf32>, vector<8x256xf32> -> vector<8x256xf32>
    %c2 = arith.constant 2 : index
    %c0_18 = arith.constant 0 : index
    %35 = vector.load %arg4[%c2, %c0_18] : memref<8x256xf32, #tpu.memory_space<vmem>>, vector<1x256xf32>
    %36 = vector.broadcast %35 : vector<1x256xf32> to vector<8x256xf32>
    %37 = arith.addf %34, %36 : vector<8x256xf32>
    %38 = vector.extract_strided_slice %32 {offsets = [0, 0], sizes = [8, 128], strides = [1, 1]} : vector<8x256xf32> to vector<8x128xf32>
    %39 = vector.extract_strided_slice %37 {offsets = [0, 0], sizes = [8, 128], strides = [1, 1]} : vector<8x256xf32> to vector<8x128xf32>
    %40 = arith.addf %38, %39 : vector<8x128xf32>
    %41 = arith.negf %40 : vector<8x128xf32>
    %42 = math.exp %41 : vector<8x128xf32>
    %cst_19 = arith.constant 1.000000e+00 : f32
    %43 = vector.broadcast %cst_19 : f32 to vector<8x128xf32>
    %44 = arith.addf %43, %42 : vector<8x128xf32>
    %45 = arith.divf %43, %44 : vector<8x128xf32>
    %46 = vector.extract_strided_slice %45 {offsets = [0, 0], sizes = [8, 64], strides = [1, 1]} : vector<8x128xf32> to vector<8x64xf32>
    %47 = vector.extract_strided_slice %45 {offsets = [0, 64], sizes = [8, 64], strides = [1, 1]} : vector<8x128xf32> to vector<8x64xf32>
    %48 = vector.extract_strided_slice %32 {offsets = [0, 128], sizes = [8, 64], strides = [1, 1]} : vector<8x256xf32> to vector<8x64xf32>
    %49 = vector.extract_strided_slice %37 {offsets = [0, 128], sizes = [8, 64], strides = [1, 1]} : vector<8x256xf32> to vector<8x64xf32>
    %50 = arith.mulf %46, %49 : vector<8x64xf32>
    %51 = arith.addf %48, %50 : vector<8x64xf32>
    %52 = math.tanh %51 : vector<8x64xf32>
    %cst_20 = arith.constant 1.000000e+00 : f32
    %53 = vector.broadcast %cst_20 : f32 to vector<8x64xf32>
    %54 = arith.subf %53, %47 : vector<8x64xf32>
    %55 = arith.mulf %54, %52 : vector<8x64xf32>
    %56 = arith.mulf %47, %27 : vector<8x64xf32>
    %57 = arith.addf %55, %56 : vector<8x64xf32>
    %c0_21 = arith.constant 0 : index
    %c0_22 = arith.constant 0 : index
    %c0_23 = arith.constant 0 : index
    %58 = vector.load %arg8[%c0_21, %c0_22, %c0_23] : memref<2x8x64xf32, #tpu.memory_space<vmem>>, vector<1x8x64xf32>
    %59 = vector.shape_cast %58 : vector<1x8x64xf32> to vector<8x64xf32>
    %60 = vector.shape_cast %57 : vector<8x64xf32> to vector<1x8x64xf32>
    tpu.vector_store %arg8[%c0_21, %c0_22, %c0_23], %60 {strides = array<i32>} : memref<2x8x64xf32, #tpu.memory_space<vmem>>, vector<1x8x64xf32>,
    %c1_24 = arith.constant 1 : index
    %c0_25 = arith.constant 0 : index
    %c0_26 = arith.constant 0 : index
    %61 = vector.load %arg8[%c1_24, %c0_25, %c0_26] : memref<2x8x64xf32, #tpu.memory_space<vmem>>, vector<1x8x64xf32>
    %62 = vector.shape_cast %61 : vector<1x8x64xf32> to vector<8x64xf32>
    %c112 = arith.constant 112 : index
    %c0_27 = arith.constant 0 : index
    %63 = vector.load %arg3[%c112, %c0_27] : memref<288x256xf32, #tpu.memory_space<vmem>>, vector<64x256xf32>
    %cst_28 = arith.constant dense<0.000000e+00> : vector<8x256xf32>
    %64 = tpu.matmul %57, %63, %cst_28 {dimension_numbers = #tpu.dot_dimension_numbers<[1], [0], [0], [1], [0, 0, 1, 1], [], []>} : vector<8x64xf32>, vector<64x256xf32>, vector<8x256xf32> -> vector<8x256xf32>
    %c3 = arith.constant 3 : index
    %c0_29 = arith.constant 0 : index
    %65 = vector.load %arg4[%c3, %c0_29] : memref<8x256xf32, #tpu.memory_space<vmem>>, vector<1x256xf32>
    %66 = vector.broadcast %65 : vector<1x256xf32> to vector<8x256xf32>
    %67 = arith.addf %64, %66 : vector<8x256xf32>
    %c176 = arith.constant 176 : index
    %c0_30 = arith.constant 0 : index
    %68 = vector.load %arg3[%c176, %c0_30] : memref<288x256xf32, #tpu.memory_space<vmem>>, vector<64x256xf32>
    %cst_31 = arith.constant dense<0.000000e+00> : vector<8x256xf32>
    %69 = tpu.matmul %62, %68, %cst_31 {dimension_numbers = #tpu.dot_dimension_numbers<[1], [0], [0], [1], [0, 0, 1, 1], [], []>} : vector<8x64xf32>, vector<64x256xf32>, vector<8x256xf32> -> vector<8x256xf32>
    %c4 = arith.constant 4 : index
    %c0_32 = arith.constant 0 : index
    %70 = vector.load %arg4[%c4, %c0_32] : memref<8x256xf32, #tpu.memory_space<vmem>>, vector<1x256xf32>
    %71 = vector.broadcast %70 : vector<1x256xf32> to vector<8x256xf32>
    %72 = arith.addf %69, %71 : vector<8x256xf32>
    %73 = vector.extract_strided_slice %67 {offsets = [0, 0], sizes = [8, 128], strides = [1, 1]} : vector<8x256xf32> to vector<8x128xf32>
    %74 = vector.extract_strided_slice %72 {offsets = [0, 0], sizes = [8, 128], strides = [1, 1]} : vector<8x256xf32> to vector<8x128xf32>
    %75 = arith.addf %73, %74 : vector<8x128xf32>
    %76 = arith.negf %75 : vector<8x128xf32>
    %77 = math.exp %76 : vector<8x128xf32>
    %cst_33 = arith.constant 1.000000e+00 : f32
    %78 = vector.broadcast %cst_33 : f32 to vector<8x128xf32>
    %79 = arith.addf %78, %77 : vector<8x128xf32>
    %80 = arith.divf %78, %79 : vector<8x128xf32>
    %81 = vector.extract_strided_slice %80 {offsets = [0, 0], sizes = [8, 64], strides = [1, 1]} : vector<8x128xf32> to vector<8x64xf32>
    %82 = vector.extract_strided_slice %80 {offsets = [0, 64], sizes = [8, 64], strides = [1, 1]} : vector<8x128xf32> to vector<8x64xf32>
    %83 = vector.extract_strided_slice %67 {offsets = [0, 128], sizes = [8, 64], strides = [1, 1]} : vector<8x256xf32> to vector<8x64xf32>
    %84 = vector.extract_strided_slice %72 {offsets = [0, 128], sizes = [8, 64], strides = [1, 1]} : vector<8x256xf32> to vector<8x64xf32>
    %85 = arith.mulf %81, %84 : vector<8x64xf32>
    %86 = arith.addf %83, %85 : vector<8x64xf32>
    %87 = math.tanh %86 : vector<8x64xf32>
    %cst_34 = arith.constant 1.000000e+00 : f32
    %88 = vector.broadcast %cst_34 : f32 to vector<8x64xf32>
    %89 = arith.subf %88, %82 : vector<8x64xf32>
    %90 = arith.mulf %89, %87 : vector<8x64xf32>
    %91 = arith.mulf %82, %62 : vector<8x64xf32>
    %92 = arith.addf %90, %91 : vector<8x64xf32>
    %c1_35 = arith.constant 1 : index
    %c0_36 = arith.constant 0 : index
    %c0_37 = arith.constant 0 : index
    %93 = vector.load %arg8[%c1_35, %c0_36, %c0_37] : memref<2x8x64xf32, #tpu.memory_space<vmem>>, vector<1x8x64xf32>
    %94 = vector.shape_cast %93 : vector<1x8x64xf32> to vector<8x64xf32>
    %95 = vector.shape_cast %92 : vector<8x64xf32> to vector<1x8x64xf32>
    tpu.vector_store %arg8[%c1_35, %c0_36, %c0_37], %95 {strides = array<i32>} : memref<2x8x64xf32, #tpu.memory_space<vmem>>, vector<1x8x64xf32>,
    %96 = vector.extract_strided_slice %92 {offsets = [0, 0], sizes = [8, 32], strides = [1, 1]} : vector<8x64xf32> to vector<8x32xf32>
    %97 = vector.extract_strided_slice %92 {offsets = [0, 32], sizes = [8, 32], strides = [1, 1]} : vector<8x64xf32> to vector<8x32xf32>
    %c4_i32_38 = arith.constant 4 : i32
    %98 = tpu.dynamic_rotate %97 by %c4_i32_38 dim 0 : vector<8x32xf32>, i32 -> vector<8x32xf32>
    %99 = arith.subf %96, %98 : vector<8x32xf32>
    %100 = arith.addf %96, %98 : vector<8x32xf32>
    %101 = vector.shape_cast %7 : vector<8x1xi1> to vector<8x1xi1>
    %102 = vector.broadcast %101 : vector<8x1xi1> to vector<8x32xi1>
    %103 = arith.select %102, %99, %100 : vector<8x32xi1>, vector<8x32xf32>
    %c240 = arith.constant 240 : index
    %c0_39 = arith.constant 0 : index
    %104 = vector.load %arg3[%c240, %c0_39] : memref<288x256xf32, #tpu.memory_space<vmem>>, vector<32x256xf32>
    %cst_40 = arith.constant dense<0.000000e+00> : vector<8x256xf32>
    %105 = tpu.matmul %103, %104, %cst_40 {dimension_numbers = #tpu.dot_dimension_numbers<[1], [0], [0], [1], [0, 0, 1, 1], [], []>} : vector<8x32xf32>, vector<32x256xf32>, vector<8x256xf32> -> vector<8x256xf32>
    %c5 = arith.constant 5 : index
    %c0_41 = arith.constant 0 : index
    %106 = vector.load %arg4[%c5, %c0_41] : memref<8x256xf32, #tpu.memory_space<vmem>>, vector<1x256xf32>
    %107 = vector.broadcast %106 : vector<1x256xf32> to vector<8x256xf32>
    %108 = arith.addf %105, %107 : vector<8x256xf32>
    %109 = vector.extract_strided_slice %108 {offsets = [0, 0], sizes = [8, 16], strides = [1, 1]} : vector<8x256xf32> to vector<8x16xf32>
    %110 = vector.extract_strided_slice %108 {offsets = [0, 16], sizes = [8, 16], strides = [1, 1]} : vector<8x256xf32> to vector<8x16xf32>
    %111 = vector.shape_cast %7 : vector<8x1xi1> to vector<8x1xi1>
    %112 = vector.broadcast %111 : vector<8x1xi1> to vector<8x16xi1>
    %113 = arith.select %112, %109, %110 : vector<8x16xi1>, vector<8x16xf32>
    %cst_42 = arith.constant 0.000000e+00 : f32
    %114 = vector.broadcast %cst_42 : f32 to vector<8x16xf32>
    %115 = arith.cmpf oge, %113, %114 : vector<8x16xf32>
    %116 = vector.broadcast %4 : f32 to vector<8x16xf32>
    %117 = arith.mulf %116, %113 : vector<8x16xf32>
    %118 = arith.select %115, %113, %117 : vector<8x16xi1>, vector<8x16xf32>
    %c272 = arith.constant 272 : index
    %c0_43 = arith.constant 0 : index
    %119 = vector.load %arg3[%c272, %c0_43] : memref<288x256xf32, #tpu.memory_space<vmem>>, vector<16x256xf32>
    %cst_44 = arith.constant dense<0.000000e+00> : vector<8x256xf32>
    %120 = tpu.matmul %118, %119, %cst_44 {dimension_numbers = #tpu.dot_dimension_numbers<[1], [0], [0], [1], [0, 0, 1, 1], [], []>} : vector<8x16xf32>, vector<16x256xf32>, vector<8x256xf32> -> vector<8x256xf32>
    %c6 = arith.constant 6 : index
    %c0_45 = arith.constant 0 : index
    %121 = vector.load %arg4[%c6, %c0_45] : memref<8x256xf32, #tpu.memory_space<vmem>>, vector<1x256xf32>
    %122 = vector.broadcast %121 : vector<1x256xf32> to vector<8x256xf32>
    %123 = arith.addf %120, %122 : vector<8x256xf32>
    %124 = vector.extract_strided_slice %123 {offsets = [0, 0], sizes = [8, 128], strides = [1, 1]} : vector<8x256xf32> to vector<8x128xf32>
    %c0_46 = arith.constant 0 : index
    %c0_47 = arith.constant 0 : index
    %c0_48 = arith.constant 0 : index
    %125 = vector.load %arg6[%c0_46, %c0_47, %c0_48] : memref<1x8x128xf32, #tpu.memory_space<vmem>>, vector<1x8x128xf32>
    %126 = vector.shape_cast %125 : vector<1x8x128xf32> to vector<8x128xf32>
    %127 = vector.shape_cast %124 : vector<8x128xf32> to vector<1x8x128xf32>
    tpu.vector_store %arg6[%c0_46, %c0_47, %c0_48], %127 {strides = array<i32>} : memref<1x8x128xf32, #tpu.memory_space<vmem>>, vector<1x8x128xf32>,
    %c7_i32 = arith.constant 7 : i32
    %128 = arith.cmpi eq, %arg0, %c7_i32 : i32
    %129 = arith.extui %128 : i1 to i32
    %c0_i32_49 = arith.constant 0 : i32
    %130 = arith.cmpi ne, %129, %c0_i32_49 : i32
    scf.if %130 {
      %c0_50 = arith.constant 0 : index
      %c0_51 = arith.constant 0 : index
      %c0_52 = arith.constant 0 : index
      %131 = vector.load %arg8[%c0_50, %c0_51, %c0_52] : memref<2x8x64xf32, #tpu.memory_space<vmem>>, vector<2x8x64xf32>
      %c0_53 = arith.constant 0 : index
      %c0_54 = arith.constant 0 : index
      %c0_55 = arith.constant 0 : index
      %132 = vector.load %arg7[%c0_53, %c0_54, %c0_55] : memref<2x8x64xf32, #tpu.memory_space<vmem>>, vector<2x8x64xf32>
      tpu.vector_store %arg7[%c0_53, %c0_54, %c0_55], %131 {strides = array<i32>} : memref<2x8x64xf32, #tpu.memory_space<vmem>>, vector<2x8x64xf32>,
    } else {
    }
    return
  }
  func.func @transform_0(%arg0: i32) -> (i32, i32, i32) {
    %c0_i32 = arith.constant 0 : i32
    %c0_i32_0 = arith.constant 0 : i32
    %c0_i32_1 = arith.constant 0 : i32
    return %arg0, %c0_i32, %c0_i32_0 : i32, i32, i32
  }
  func.func @transform_1(%arg0: i32) -> (i32, i32, i32) {
    %c0_i32 = arith.constant 0 : i32
    %c0_i32_0 = arith.constant 0 : i32
    %c0_i32_1 = arith.constant 0 : i32
    %c0_i32_2 = arith.constant 0 : i32
    return %c0_i32, %c0_i32_0, %c0_i32_1 : i32, i32, i32
  }
  func.func @transform_2(%arg0: i32) -> (i32, i32) {
    %c0_i32 = arith.constant 0 : i32
    %c0_i32_0 = arith.constant 0 : i32
    %c0_i32_1 = arith.constant 0 : i32
    return %c0_i32, %c0_i32_0 : i32, i32
  }
  func.func @transform_3(%arg0: i32) -> (i32, i32) {
    %c0_i32 = arith.constant 0 : i32
    %c0_i32_0 = arith.constant 0 : i32
    %c0_i32_1 = arith.constant 0 : i32
    return %c0_i32, %c0_i32_0 : i32, i32
  }
  func.func @transform_4(%arg0: i32) -> i32 {
    %c0_i32 = arith.constant 0 : i32
    %c0_i32_0 = arith.constant 0 : i32
    return %c0_i32 : i32
  }
  func.func @transform_5(%arg0: i32) -> (i32, i32, i32) {
    %c0_i32 = arith.constant 0 : i32
    %c0_i32_0 = arith.constant 0 : i32
    %c0_i32_1 = arith.constant 0 : i32
    return %arg0, %c0_i32, %c0_i32_0 : i32, i32, i32
  }
  func.func @transform_6(%arg0: i32) -> (i32, i32, i32) {
    %c0_i32 = arith.constant 0 : i32
    %c0_i32_0 = arith.constant 0 : i32
    %c0_i32_1 = arith.constant 0 : i32
    %c0_i32_2 = arith.constant 0 : i32
    return %c0_i32, %c0_i32_0, %c0_i32_1 : i32, i32, i32
  }
}

</mosaic_0001>

<llo_original>
// kernel: tpu_custom_call.1
$region0: #{tpu_custom_call.1}
  #allocation0 [shape = 'u32[]', space=smem, size = 0x4, offset = 0x4, fixed_abs, tag = 'smem constant byte address 0x4 - core index']
  #allocation1 [shape = 'u32[144,128]{1,0:T(1,128)}', space=vmem, size = 0x12000, scoped, tag = 'internal scratch']
  #allocation2 [shape = 'f32[2,8,64]{2,1,0:T(8,128)}', space=vmem, size = 0x2000, scoped, tag = 'scratch operand']
  %s0 = inlined_call_operand.hbm [shape: f32[8,8,16], index: 0, kind: input, shape index: {}]
  %s1 = inlined_call_operand.hbm [shape: f32[2,8,64], index: 1, kind: input, shape index: {}]
  %s2 = inlined_call_operand.hbm [shape: f32[288,256], index: 2, kind: input, shape index: {}]
  %s3 = inlined_call_operand.hbm [shape: f32[8,256], index: 3, kind: input, shape index: {}]
  %s4 = inlined_call_operand.vmem [shape: f32[2], index: 4, kind: input, shape index: {}]
  %s5 = inlined_call_operand.hbm [shape: f32[8,8,128], index: 5, kind: output, shape index: {0}]
  %s6 = inlined_call_operand.hbm [shape: f32[2,8,64], index: 6, kind: output, shape index: {1}]
  %7 = xla_tuple %s5, %s6
  %s8 = sld [smem:[#allocation0]]
  $region89: #{tpu_custom_call.1} parent=0
    _
  %s10 = ssub.s32 1, %s8
  %s11 = scalar_select 0, %s10, %s8
  $region1: #{tpu_custom_call.1} parent=0
    #allocation3 [shape = 'u8[8192]{0}', space=vmem, size = 0x2000, scoped, tag = 'input window, operand 0']
    #allocation4 [shape = 's32[2]{0}', space=sflag, size = 0x8, scoped, tag = 'scoped memory for tpu_custom_call.1']
    #allocation5 [shape = 's32[2]{0}', space=sflag, size = 0x8, scoped, tag = 'scoped memory for tpu_custom_call.1']
    #allocation6 [shape = 's32[2]{0}', space=sflag, size = 0x8, scoped, tag = 'scoped memory for tpu_custom_call.1']
    #allocation7 [shape = 'u8[8192]{0}', space=vmem, size = 0x2000, scoped, tag = 'input window, operand 1, single buffered']
    #allocation8 [shape = 's32[1]{0}', space=sflag, size = 0x4, scoped, tag = 'scoped memory for tpu_custom_call.1']
    #allocation9 [shape = 'u8[294912]{0}', space=vmem, size = 0x48000, scoped, tag = 'input window, operand 2, single buffered']
    #allocation10 [shape = 'u8[8192]{0}', space=vmem, size = 0x2000, scoped, tag = 'input window, operand 3, single buffered']
    #allocation11 [shape = 's32[1]{0}', space=sflag, size = 0x4, scoped, tag = 'scoped memory for tpu_custom_call.1']
    #allocation12 [shape = 'u8[512]{0}', space=smem, size = 0x200, scoped, tag = 'input window, operand 4, single buffered']
    #allocation13 [shape = 'u8[8192]{0}', space=vmem, size = 0x2000, scoped, tag = 'output window, operand 0']
    #allocation14 [shape = 'u8[8192]{0}', space=vmem, size = 0x2000, scoped, tag = 'output window, operand 1, single buffered']
    #allocation15 [shape = 's32[1]{0}', space=sflag, size = 0x4, scoped, tag = 'scoped memory for tpu_custom_call.1']
    %12 = vsyncpa [#allocation4], 0
    %s13 = scalar_lea.sflag [#allocation4], 1
    %14 = vsyncpa %s13, 0
    %15 = vsyncpa [#allocation8], 0
    %16 = vsyncpa [#allocation11], 0
    %17 = vsyncpa [#allocation6], 0
    %18 = vsyncpa [#allocation5], 0
    %s19 = scalar_lea.sflag [#allocation5], 1
    %20 = vsyncpa %s19, 0
    %21 = vsyncpa [#allocation15], 0
    loop: start=0, step=1, limit=10
    $region2: #{tpu_custom_call.1} parent=1 // loop_pre_header
      _
    $region3: #{tpu_custom_call.1} parent=1 // loop_header
      %s23 = sphi 0, %s27
      %p24 = scmp.ge.s32.totalorder %s23, 10
      %s33 = sphi 0, %s35
      %s36 = sphi 0, %s33
      %s37 = sphi 0, %s36
      %s53 = sphi 0, %s37
      %s57 = sphi 0, %s57
      %s59 = sphi 0, %s57
      %s60 = sphi 0, %s59
      %s74 = sphi 0, %s60
      %s78 = sphi 0, %s78
      %s80 = sphi 0, %s78
      %s81 = sphi 0, %s80
      %s95 = sphi 0, %s81
      %s99 = sphi 0, %s99
      %s101 = sphi 0, %s99
      %s102 = sphi 0, %s101
      %s116 = sphi 0, %s102
      %s120 = sphi 0, %s120
      %s122 = sphi 0, %s120
      %s123 = sphi 0, %s122
      %s137 = sphi 0, %s123
      %s143 = sphi 0, %s145
      %s146 = sphi 0, %s143
      %s147 = sphi 0, %s146
      %s163 = sphi 0, %s147
      %s167 = sphi 0, %s167
      %s169 = sphi 0, %s167
      %s170 = sphi 0, %s169
      %s184 = sphi 0, %s170
    $region4: #{tpu_custom_call.1} parent=1 // loop_header_branch
      %26 = sbr.rel (%p24) target = $region8
    $region5: #{tpu_custom_call.1} parent=1 // loop_body
      %s28 = ssub.s32 %s23, 1
      %s29 = ssub.s32 %s23, 2
      %s30 = sadd.s32 %s23, 1
      %s31 = ssub.s32 %s23, %s30
      %p32 = scmp.eq.s32.totalorder %s31, 0
      %s34 = sadd.s32 %s33, 1
      %s35 = scalar_select %p32, %s33, %s34
      %p38 = pneg %p32
      %p39 = scmp.eq.s32.totalorder %s23, 7
      %p40 = por %p38, %p39
      %p41 = scmp.ne.s32.totalorder %s33, %s36
      %p42 = scmp.eq.s32.totalorder %s23, 0
      %p43 = por %p41, %p42
      %p44 = scmp.ne.s32.totalorder %s33, %s36
      %p45 = scmp.eq.s32.totalorder %s28, 7
      %p46 = por %p44, %p45
      %p47 = scmp.ne.s32.totalorder %s36, %s37
      %p48 = scmp.eq.s32.totalorder %s28, 0
      %p49 = por %p47, %p48
      %p50 = scmp.ne.s32.totalorder %s36, %s37
      %p51 = scmp.eq.s32.totalorder %s29, 7
      %p52 = por %p50, %p51
      %p54 = scmp.ne.s32.totalorder %s37, %s53
      %p55 = scmp.eq.s32.totalorder %s29, 0
      %p56 = por %p54, %p55
      %s58 = sadd.s32 %s57, 1
      %p61 = scmp.eq.s32.totalorder %s23, 7
      %p62 = scmp.ne.s32.totalorder %s57, %s59
      %p63 = scmp.eq.s32.totalorder %s23, 0
      %p64 = por %p62, %p63
      %p65 = scmp.ne.s32.totalorder %s57, %s59
      %p66 = scmp.eq.s32.totalorder %s28, 7
      %p67 = por %p65, %p66
      %p68 = scmp.ne.s32.totalorder %s59, %s60
      %p69 = scmp.eq.s32.totalorder %s28, 0
      %p70 = por %p68, %p69
      %p71 = scmp.ne.s32.totalorder %s59, %s60
      %p72 = scmp.eq.s32.totalorder %s29, 7
      %p73 = por %p71, %p72
      %p75 = scmp.ne.s32.totalorder %s60, %s74
      %p76 = scmp.eq.s32.totalorder %s29, 0
      %p77 = por %p75, %p76
      %s79 = sadd.s32 %s78, 1
      %p82 = scmp.eq.s32.totalorder %s23, 7
      %p83 = scmp.ne.s32.totalorder %s78, %s80
      %p84 = scmp.eq.s32.totalorder %s23, 0
      %p85 = por %p83, %p84
      %p86 = scmp.ne.s32.totalorder %s78, %s80
      %p87 = scmp.eq.s32.totalorder %s28, 7
      %p88 = por %p86, %p87
      %p89 = scmp.ne.s32.totalorder %s80, %s81
      %p90 = scmp.eq.s32.totalorder %s28, 0
      %p91 = por %p89, %p90
      %p92 = scmp.ne.s32.totalorder %s80, %s81
      %p93 = scmp.eq.s32.totalorder %s29, 7
      %p94 = por %p92, %p93
      %p96 = scmp.ne.s32.totalorder %s81, %s95
      %p97 = scmp.eq.s32.totalorder %s29, 0
      %p98 = por %p96, %p97
      %s100 = sadd.s32 %s99, 1
      %p103 = scmp.eq.s32.totalorder %s23, 7
      %p104 = scmp.ne.s32.totalorder %s99, %s101
      %p105 = scmp.eq.s32.totalorder %s23, 0
      %p106 = por %p104, %p105
      %p107 = scmp.ne.s32.totalorder %s99, %s101
      %p108 = scmp.eq.s32.totalorder %s28, 7
      %p109 = por %p107, %p108
      %p110 = scmp.ne.s32.totalorder %s101, %s102
      %p111 = scmp.eq.s32.totalorder %s28, 0
      %p112 = por %p110, %p111
      %p113 = scmp.ne.s32.totalorder %s101, %s102
      %p114 = scmp.eq.s32.totalorder %s29, 7
      %p115 = por %p113, %p114
      %p117 = scmp.ne.s32.totalorder %s102, %s116
      %p118 = scmp.eq.s32.totalorder %s29, 0
      %p119 = por %p117, %p118
      %s121 = sadd.s32 %s120, 1
      %p124 = scmp.eq.s32.totalorder %s23, 7
      %p125 = scmp.ne.s32.totalorder %s120, %s122
      %p126 = scmp.eq.s32.totalorder %s23, 0
      %p127 = por %p125, %p126
      %p128 = scmp.ne.s32.totalorder %s120, %s122
      %p129 = scmp.eq.s32.totalorder %s28, 7
      %p130 = por %p128, %p129
      %p131 = scmp.ne.s32.totalorder %s122, %s123
      %p132 = scmp.eq.s32.totalorder %s28, 0
      %p133 = por %p131, %p132
      %p134 = scmp.ne.s32.totalorder %s122, %s123
      %p135 = scmp.eq.s32.totalorder %s29, 7
      %p136 = por %p134, %p135
      %p138 = scmp.ne.s32.totalorder %s123, %s137
      %p139 = scmp.eq.s32.totalorder %s29, 0
      %p140 = por %p138, %p139
      %s141 = ssub.s32 %s23, %s30
      %p142 = scmp.eq.s32.totalorder %s141, 0
      %s144 = sadd.s32 %s143, 1
      %s145 = scalar_select %p142, %s143, %s144
      %p148 = pneg %p142
      %p149 = scmp.eq.s32.totalorder %s23, 7
      %p150 = por %p148, %p149
      %p151 = scmp.ne.s32.totalorder %s143, %s146
      %p152 = scmp.eq.s32.totalorder %s23, 0
      %p153 = por %p151, %p152
      %p154 = scmp.ne.s32.totalorder %s143, %s146
      %p155 = scmp.eq.s32.totalorder %s28, 7
      %p156 = por %p154, %p155
      %p157 = scmp.ne.s32.totalorder %s146, %s147
      %p158 = scmp.eq.s32.totalorder %s28, 0
      %p159 = por %p157, %p158
      %p160 = scmp.ne.s32.totalorder %s146, %s147
      %p161 = scmp.eq.s32.totalorder %s29, 7
      %p162 = por %p160, %p161
      %p164 = scmp.ne.s32.totalorder %s147, %s163
      %p165 = scmp.eq.s32.totalorder %s29, 0
      %p166 = por %p164, %p165
      %s168 = sadd.s32 %s167, 1
      %p171 = scmp.eq.s32.totalorder %s23, 7
      %p172 = scmp.ne.s32.totalorder %s167, %s169
      %p173 = scmp.eq.s32.totalorder %s23, 0
      %p174 = por %p172, %p173
      %p175 = scmp.ne.s32.totalorder %s167, %s169
      %p176 = scmp.eq.s32.totalorder %s28, 7
      %p177 = por %p175, %p176
      %p178 = scmp.ne.s32.totalorder %s169, %s170
      %p179 = scmp.eq.s32.totalorder %s28, 0
      %p180 = por %p178, %p179
      %p181 = scmp.ne.s32.totalorder %s169, %s170
      %p182 = scmp.eq.s32.totalorder %s29, 7
      %p183 = por %p181, %p182
      %p185 = scmp.ne.s32.totalorder %s170, %s184
      %p186 = scmp.eq.s32.totalorder %s29, 0
      %p187 = por %p185, %p186
      %p188 = scmp.le.s32.totalorder 1, %s23
      %p189 = scmp.lt.s32.totalorder %s23, 9
      %p190 = pnand %p188, %p189
      %p191 = pneg %p190
      // Predicated region
      $region9: #{tpu_custom_call.1} parent=5 // pred_check
        _
      $region10: #{tpu_custom_call.1} parent=5 // pred_check_branch
        %193 = sbr.rel (%p190) target = $region12
      $region11: #{tpu_custom_call.1} parent=5 // pred_region
        %s194 = ssub.s32 %s23, 1
        // Predicated region
        $region13: #{tpu_custom_call.1} parent=11 // pred_check
          %p195 = pneg %p70
        $region14: #{tpu_custom_call.1} parent=11 // pred_check_branch
          %197 = sbr.rel (%p195) target = $region16
        $region15: #{tpu_custom_call.1} parent=11 // pred_region
          %s199 = ssub.s32 256, 256
          %200 = vsyncadd [#allocation8], %s199
          %s201 = sshll.u32 [#allocation7], 4
          %s202 = int_to_ptr.vmem [resolvable:$true] %s201
          %207 = dma.hbm_to_vmem [thread:$0]  %s1, 256, %s202, [#allocation8], 128, 128, 8
        $region16: #{tpu_custom_call.1} parent=11 // pred_fallthru
          _
        // Predicated region
        $region17: #{tpu_custom_call.1} parent=11 // pred_check
          %p208 = pneg %p91
        $region18: #{tpu_custom_call.1} parent=11 // pred_check_branch
          %210 = sbr.rel (%p208) target = $region20
        $region19: #{tpu_custom_call.1} parent=11 // pred_region
          %s212 = ssub.s32 9216, 9216
          %213 = vsyncadd [#allocation8], %s212
          %s214 = sshll.u32 [#allocation9], 4
          %s215 = int_to_ptr.vmem [resolvable:$true] %s214
          %220 = dma.hbm_to_vmem [thread:$0]  %s2, 9216, %s215, [#allocation8], 256, 256, 16
        $region20: #{tpu_custom_call.1} parent=11 // pred_fallthru
          _
        // Predicated region
        $region21: #{tpu_custom_call.1} parent=11 // pred_check
          %p221 = pneg %p112
        $region22: #{tpu_custom_call.1} parent=11 // pred_check_branch
          %223 = sbr.rel (%p221) target = $region24
        $region23: #{tpu_custom_call.1} parent=11 // pred_region
          %s225 = ssub.s32 256, 256
          %226 = vsyncadd [#allocation11], %s225
          %s228 = sshll.u32 [#allocation10], 4
          %s229 = int_to_ptr.vmem [resolvable:$true] %s228
          %231 = dma.hbm_to_vmem [thread:$0]  %s3, 256, %s229, [#allocation11]
        $region24: #{tpu_custom_call.1} parent=11 // pred_fallthru
          _
        // Predicated region
        $region25: #{tpu_custom_call.1} parent=11 // pred_check
          %p232 = pneg %p133
        $region26: #{tpu_custom_call.1} parent=11 // pred_check_branch
          %234 = sbr.rel (%p232) target = $region28
        $region27: #{tpu_custom_call.1} parent=11 // pred_region
          %s236 = ssub.s32 16, 16
          %237 = vsyncadd [#allocation6], %s236
          %s239 = sshll.u32 %s4, 4
          %s240 = int_to_ptr.vmem [resolvable:$true] %s239
          %242 = dma.vmem_to_smem %s240, 16, [#allocation12], [#allocation6]
        $region28: #{tpu_custom_call.1} parent=11 // pred_fallthru
          _
      $region12: #{tpu_custom_call.1} parent=5 // pred_fallthru
        _
      %p243 = scmp.lt.s32.totalorder %s23, 8
      // Predicated region
      $region29: #{tpu_custom_call.1} parent=5 // pred_check
        %p244 = pneg %p243
      $region30: #{tpu_custom_call.1} parent=5 // pred_check_branch
        %246 = sbr.rel (%p244) target = $region32
      $region31: #{tpu_custom_call.1} parent=5 // pred_region
        // Predicated region
        $region33: #{tpu_custom_call.1} parent=31 // pred_check
          %p247 = pneg %p43
        $region34: #{tpu_custom_call.1} parent=31 // pred_check_branch
          %249 = sbr.rel (%p247) target = $region36
        $region35: #{tpu_custom_call.1} parent=31 // pred_region
          %s250 = sand.u32 %s33, 1
          %s251 = scalar_lea.sflag [#allocation4], %s250
          %s252 = sand.u32 %s33, 1
          %s253 = smul.addr %s252, 8
          %s254 = scalar_lea.vmem [#allocation3], %s253
          %s256 = ssub.s32 128, 128
          %257 = vsyncadd %s251, %s256
          %s258 = smul.addr %s23, 128
          %s259 = scalar_lea.hbm %s0, %s258
          %s261 = sshll.u32 %s254, 4
          %s262 = int_to_ptr.vmem [resolvable:$true] %s261
          %264 = dma.hbm_to_vmem [thread:$0]  %s259, 128, %s262, %s251
        $region36: #{tpu_custom_call.1} parent=31 // pred_fallthru
          _
      $region32: #{tpu_custom_call.1} parent=5 // pred_fallthru
        _
      %p265 = scmp.le.s32.totalorder 1, %s23
      %p266 = scmp.lt.s32.totalorder %s23, 9
      %p267 = pnand %p265, %p266
      %p268 = pneg %p267
      // Predicated region
      $region37: #{tpu_custom_call.1} parent=5 // pred_check
        _
      $region38: #{tpu_custom_call.1} parent=5 // pred_check_branch
        %270 = sbr.rel (%p267) target = $region40
      $region39: #{tpu_custom_call.1} parent=5 // pred_region
        %s271 = ssub.s32 %s23, 1
        %s272 = sand.u32 %s36, 1
        %s273 = scalar_lea.sflag [#allocation4], %s272
        %s274 = sand.u32 %s36, 1
        %s275 = smul.addr %s274, 8
        %s276 = scalar_lea.vmem [#allocation3], %s275
        // Predicated region
        $region41: #{tpu_custom_call.1} parent=39 // pred_check
          %p277 = pneg %p49
        $region42: #{tpu_custom_call.1} parent=39 // pred_check_branch
          %279 = sbr.rel (%p277) target = $region44
        $region43: #{tpu_custom_call.1} parent=39 // pred_region
          %280 = dma.done %s273, 128
        $region44: #{tpu_custom_call.1} parent=39 // pred_fallthru
          _
        // Predicated region
        $region45: #{tpu_custom_call.1} parent=39 // pred_check
          %p281 = pneg %p70
        $region46: #{tpu_custom_call.1} parent=39 // pred_check_branch
          %283 = sbr.rel (%p281) target = $region48
        $region47: #{tpu_custom_call.1} parent=39 // pred_region
          %284 = dma.done [#allocation8], 256
        $region48: #{tpu_custom_call.1} parent=39 // pred_fallthru
          _
        // Predicated region
        $region49: #{tpu_custom_call.1} parent=39 // pred_check
          %p285 = pneg %p91
        $region50: #{tpu_custom_call.1} parent=39 // pred_check_branch
          %287 = sbr.rel (%p285) target = $region52
        $region51: #{tpu_custom_call.1} parent=39 // pred_region
          %288 = dma.done [#allocation8], 9216
        $region52: #{tpu_custom_call.1} parent=39 // pred_fallthru
          _
        // Predicated region
        $region53: #{tpu_custom_call.1} parent=39 // pred_check
          %p289 = pneg %p112
        $region54: #{tpu_custom_call.1} parent=39 // pred_check_branch
          %291 = sbr.rel (%p289) target = $region56
        $region55: #{tpu_custom_call.1} parent=39 // pred_region
          %292 = dma.done [#allocation11], 256
        $region56: #{tpu_custom_call.1} parent=39 // pred_fallthru
          _
        // Predicated region
        $region57: #{tpu_custom_call.1} parent=39 // pred_check
          %p293 = pneg %p133
        $region58: #{tpu_custom_call.1} parent=39 // pred_check_branch
          %295 = sbr.rel (%p293) target = $region60
        $region59: #{tpu_custom_call.1} parent=39 // pred_region
          %296 = dma.done [#allocation6], 16
        $region60: #{tpu_custom_call.1} parent=39 // pred_fallthru
          _
        %297 = sfence
        %s298 = sand.u32 %s36, 1
        %s299 = scalar_lea.sflag [#allocation4], %s298
        %s300 = sand.u32 %s36, 1
        %s301 = smul.addr %s300, 8
        %s302 = scalar_lea.vmem [#allocation3], %s301
        %p303 = pneg %p49
        %p304 = pneg %p46
        %p305 = pneg %p70
        %p306 = pneg %p67
        %p307 = pneg %p91
        %p308 = pneg %p88
        %p309 = pneg %p112
        %p310 = pneg %p109
        %p311 = pneg %p133
        %p312 = pneg %p130
        %p313 = pneg %p159
        %p314 = pneg %p156
        %s315 = sand.u32 %s146, 1
        %s316 = scalar_lea.sflag [#allocation5], %s315
        %s317 = sand.u32 %s146, 1
        %s318 = smul.addr %s317, 8
        %s319 = scalar_lea.vmem [#allocation13], %s318
        %p320 = pneg %p180
        %p321 = pneg %p177
        %p322 = scmp.eq.s32.totalorder %s28, 0
        // Predicated region
        $region61: #{tpu_custom_call.1} parent=39 // pred_check
          %p323 = pneg %p322
        $region62: #{tpu_custom_call.1} parent=39 // pred_check_branch
          %325 = sbr.rel (%p323) target = $region64
        $region63: #{tpu_custom_call.1} parent=39 // pred_region
          %v326 = vld [vmem:[#allocation7] sm:$0xff]
          %v327 = vld [vmem:[#allocation7 + $0x8] sm:$0xff]
          %vm328 = vcmask 523264
          %329 = vst.msk [vmem:[#allocation2] sm:$0xff] %vm328, %v326
          %330 = vst.msk [vmem:[#allocation2 + $0x8] sm:$0xff] %vm328, %v327
        $region64: #{tpu_custom_call.1} parent=39 // pred_fallthru
          _
        %s331 = sld [smem:[#allocation12]]
        %s332 = sld [smem:[#allocation12 + $0x1]]
        %v333 = vlaneseq
        %v334 = vshrl.u32 %v333, 7
        %vm335 = vcmp.lt.s32.totalorder %v334, 4
        %v336 = vld [vmem:[%s276] sm:$0xff]
        %v337 = vld [vmem:[#allocation9] sm:$0xff]
        %v338 = vld [vmem:[#allocation9 + $0x8] sm:$0xff]
        %v339 = vld [vmem:[#allocation9 + $0x10] sm:$0xff]
        %v340 = vld [vmem:[#allocation9 + $0x18] sm:$0xff]
        %v341 = vld [vmem:[#allocation10] ss:$8 sm:$0x3]
        %v343 = vlaneseq
        %v344 = vshrl.u32 %v343, 7
        %v345 = vsub.s32 0, %v344
        %v346 = vrot.slane %v341, %v345
        %vm348 = vcmask 130048
        %v350 = vsel %vm348, %v336, 0
        %352 = vmatprep.subr.mxu0 0.0
        %353 = vmatpush1.msra.mxu0 0.0
        %354 = vmatprep.subr.mxu0 0.0
        %355 = vmatpush1.msra.mxu0 0.0
        %356 = vmatprep.subr.mxu0 0.0
        %357 = vmatpush1.msra.mxu0 0.0
        %358 = vmatprep.subr.mxu0 0.0
        %359 = vmatpush1.msra.mxu0 0.0
        %360 = vmatprep.subr.mxu0 0.0
        %361 = vmatpush1.msra.mxu0 0.0
        %362 = vmatprep.subr.mxu0 0.0
        %363 = vmatpush1.msra.mxu0 0.0
        %364 = vmatprep.subr.mxu0 0.0
        %365 = vmatpush1.msra.mxu0 0.0
        %366 = vmatprep.subr.mxu0 0.0
        %367 = vmatpush1.msra.mxu0 0.0
        %368 = vmatprep.subr.mxu0 0.0
        %369 = vmatpush1.msra.mxu0 0.0
        %370 = vmatprep.subr.mxu0 0.0
        %371 = vmatpush1.msra.mxu0 0.0
        %372 = vmatprep.subr.mxu0 0.0
        %373 = vmatpush1.msra.mxu0 0.0
        %374 = vmatprep.subr.mxu0 0.0
        %375 = vmatpush1.msra.mxu0 0.0
        %376 = vmatprep.subr.mxu0 0.0
        %377 = vmatpush1.msra.mxu0 0.0
        %378 = vmatprep.subr.mxu0 0.0
        %379 = vmatpush1.msra.mxu0 0.0
        %380 = vmatprep.subr.mxu0 %v340
        %381 = vmatpush1.msra.mxu0 %v339
        %382 = vmatprep.subr.mxu0 %v338
        %383 = vmatpush1.msra.mxu0 %v337
        %384 = vmatprep.subr.mxu0 0.0
        %385 = vmatpush2.msra.mxu0 0.0
        %386 = vmatprep.subr.mxu0 0.0
        %387 = vmatpush2.msra.mxu0 0.0
        %388 = vmatprep.subr.mxu0 0.0
        %389 = vmatpush2.msra.mxu0 0.0
        %390 = vmatprep.subr.mxu0 0.0
        %391 = vmatpush2.msra.mxu0 0.0
        %392 = vmatprep.subr.mxu0 0.0
        %393 = vmatpush2.msra.mxu0 0.0
        %394 = vmatprep.subr.mxu0 0.0
        %395 = vmatpush2.msra.mxu0 0.0
        %396 = vmatprep.subr.mxu0 0.0
        %397 = vmatpush2.msra.mxu0 0.0
        %398 = vmatprep.subr.mxu0 0.0
        %399 = vmatpush2.msra.mxu0 0.0
        %400 = vmatprep.subr.mxu0 0.0
        %401 = vmatpush2.msra.mxu0 0.0
        %402 = vmatprep.subr.mxu0 0.0
        %403 = vmatpush2.msra.mxu0 0.0
        %404 = vmatprep.subr.mxu0 0.0
        %405 = vmatpush2.msra.mxu0 0.0
        %406 = vmatprep.subr.mxu0 0.0
        %407 = vmatpush2.msra.mxu0 0.0
        %408 = vmatprep.subr.mxu0 0.0
        %409 = vmatpush2.msra.mxu0 0.0
        %410 = vmatprep.subr.mxu0 0.0
        %411 = vmatpush2.msra.mxu0 0.0
        %412 = vmatprep.subr.mxu0 0.0
        %413 = vmatpush2.msra.mxu0 0.0
        %414 = vmatprep.subr.mxu0 0.0
        %415 = vmatpush2.msra.mxu0 0.0
        %416 = vmatprep.mubr.f32.mxu0 0.0
        %417 = vmatmul.mubr.f32.gmra.mxu0 %v350
        %v418 = vpop.f32.mrf.mxu0
        %v419 = vadd.f32 %v346, %v418
        %v420 = vpop.f32.mrf.mxu0
        %421 = vdwg.mxu0
        %v422 = vsel %vm335, 1, 0
        %vm423 = vcmp.eq.s32.totalorder %v422, 1
        %425 = vrot.lane.b32.xlu0 %v419, 112
        %v426 = vpop.permute.xlu0 %425
        %v428 = vsel %vm423, %v419, %v426
        %vm429 = vcmp.ge.f32.partialorder %v428, 0.0
        %v430 = vstv %s331
        %v431 = vmul.f32 %v430, %v428
        %v432 = vsel %vm429, %v428, %v431
        %434 = vrot.lane.b32.xlu0 %v432, 16
        %v435 = vpop.permute.xlu0 %434
        %v437 = vsel %vm348, %v432, %v435
        %v438 = vld [vmem:[#allocation2] sm:$0xff]
        %v439 = vld [vmem:[#allocation9 + $0x20] sm:$0xff]
        %v440 = vld [vmem:[#allocation9 + $0x28] sm:$0xff]
        %v441 = vld [vmem:[#allocation9 + $0x30] sm:$0xff]
        %v442 = vld [vmem:[#allocation9 + $0x38] sm:$0xff]
        %v443 = vld [vmem:[#allocation9 + $0x40] sm:$0xff]
        %v444 = vld [vmem:[#allocation9 + $0x48] sm:$0xff]
        %v445 = vld [vmem:[#allocation9 + $0x50] sm:$0xff]
        %v446 = vld [vmem:[#allocation9 + $0x58] sm:$0xff]
        %s447 = scalar_lea.vmem [#allocation10], 1
        %v448 = vld [vmem:[%s447] ss:$8 sm:$0x3]
        %v450 = vlaneseq
        %v451 = vshrl.u32 %v450, 7
        %v452 = vsub.s32 0, %v451
        %v453 = vrot.slane %v448, %v452
        %v454 = vlaneseq
        %v455 = vshrl.u32 %v454, 7
        %v456 = vsub.s32 1, %v455
        %v457 = vrot.slane %v448, %v456
        %vm460 = vcmask 261120
        %v462 = vsel %vm460, %v437, 0
        %464 = vmatprep.subr.mxu0 0.0
        %465 = vmatpush1.msra.mxu0 0.0
        %466 = vmatprep.subr.mxu0 0.0
        %467 = vmatpush1.msra.mxu0 0.0
        %468 = vmatprep.subr.mxu0 0.0
        %469 = vmatpush1.msra.mxu0 0.0
        %470 = vmatprep.subr.mxu0 0.0
        %471 = vmatpush1.msra.mxu0 0.0
        %472 = vmatprep.subr.mxu0 0.0
        %473 = vmatpush1.msra.mxu0 0.0
        %474 = vmatprep.subr.mxu0 0.0
        %475 = vmatpush1.msra.mxu0 0.0
        %476 = vmatprep.subr.mxu0 0.0
        %477 = vmatpush1.msra.mxu0 0.0
        %478 = vmatprep.subr.mxu0 0.0
        %479 = vmatpush1.msra.mxu0 0.0
        %480 = vmatprep.subr.mxu0 0.0
        %481 = vmatpush1.msra.mxu0 0.0
        %482 = vmatprep.subr.mxu0 0.0
        %483 = vmatpush1.msra.mxu0 0.0
        %484 = vmatprep.subr.mxu0 0.0
        %485 = vmatpush1.msra.mxu0 0.0
        %486 = vmatprep.subr.mxu0 0.0
        %487 = vmatpush1.msra.mxu0 0.0
        %488 = vmatprep.subr.mxu0 %v446
        %489 = vmatpush1.msra.mxu0 %v445
        %490 = vmatprep.subr.mxu0 %v444
        %491 = vmatpush1.msra.mxu0 %v443
        %492 = vmatprep.subr.mxu0 %v442
        %493 = vmatpush1.msra.mxu0 %v441
        %494 = vmatprep.subr.mxu0 %v440
        %495 = vmatpush1.msra.mxu0 %v439
        %496 = vmatprep.subr.mxu0 0.0
        %497 = vmatpush2.msra.mxu0 0.0
        %498 = vmatprep.subr.mxu0 0.0
        %499 = vmatpush2.msra.mxu0 0.0
        %500 = vmatprep.subr.mxu0 0.0
        %501 = vmatpush2.msra.mxu0 0.0
        %502 = vmatprep.subr.mxu0 0.0
        %503 = vmatpush2.msra.mxu0 0.0
        %504 = vmatprep.subr.mxu0 0.0
        %505 = vmatpush2.msra.mxu0 0.0
        %506 = vmatprep.subr.mxu0 0.0
        %507 = vmatpush2.msra.mxu0 0.0
        %508 = vmatprep.subr.mxu0 0.0
        %509 = vmatpush2.msra.mxu0 0.0
        %510 = vmatprep.subr.mxu0 0.0
        %511 = vmatpush2.msra.mxu0 0.0
        %512 = vmatprep.subr.mxu0 0.0
        %513 = vmatpush2.msra.mxu0 0.0
        %514 = vmatprep.subr.mxu0 0.0
        %515 = vmatpush2.msra.mxu0 0.0
        %516 = vmatprep.subr.mxu0 0.0
        %517 = vmatpush2.msra.mxu0 0.0
        %518 = vmatprep.subr.mxu0 0.0
        %519 = vmatpush2.msra.mxu0 0.0
        %520 = vmatprep.subr.mxu0 0.0
        %521 = vmatpush2.msra.mxu0 0.0
        %522 = vmatprep.subr.mxu0 0.0
        %523 = vmatpush2.msra.mxu0 0.0
        %524 = vmatprep.subr.mxu0 0.0
        %525 = vmatpush2.msra.mxu0 0.0
        %526 = vmatprep.subr.mxu0 0.0
        %527 = vmatpush2.msra.mxu0 0.0
        %528 = vmatprep.mubr.f32.mxu0 0.0
        %529 = vmatmul.mubr.f32.gmra.mxu0 %v462
        %v530 = vpop.f32.mrf.mxu0
        %v531 = vadd.f32 %v453, %v530
        %v532 = vpop.f32.mrf.mxu0
        %v533 = vadd.f32 %v457, %v532
        %534 = vdwg.mxu0
        %v535 = vld [vmem:[#allocation9 + $0x60] sm:$0xff]
        %v536 = vld [vmem:[#allocation9 + $0x68] sm:$0xff]
        %v537 = vld [vmem:[#allocation9 + $0x70] sm:$0xff]
        %v538 = vld [vmem:[#allocation9 + $0x78] sm:$0xff]
        %v539 = vld [vmem:[#allocation9 + $0x80] sm:$0xff]
        %v540 = vld [vmem:[#allocation9 + $0x88] sm:$0xff]
        %v541 = vld [vmem:[#allocation9 + $0x90] sm:$0xff]
        %v542 = vld [vmem:[#allocation9 + $0x98] sm:$0xff]
        %v543 = vld [vmem:[#allocation9 + $0xa0] sm:$0xff]
        %v544 = vld [vmem:[#allocation9 + $0xa8] sm:$0xff]
        %v545 = vld [vmem:[#allocation9 + $0xb0] sm:$0xff]
        %v546 = vld [vmem:[#allocation9 + $0xb8] sm:$0xff]
        %v547 = vld [vmem:[#allocation9 + $0xc0] sm:$0xff]
        %v548 = vld [vmem:[#allocation9 + $0xc8] sm:$0xff]
        %v549 = vld [vmem:[#allocation9 + $0xd0] sm:$0xff]
        %v550 = vld [vmem:[#allocation9 + $0xd8] sm:$0xff]
        %s551 = scalar_lea.vmem [#allocation10], 2
        %v552 = vld [vmem:[%s551] ss:$8 sm:$0x3]
        %v554 = vlaneseq
        %v555 = vshrl.u32 %v554, 7
        %v556 = vsub.s32 0, %v555
        %v557 = vrot.slane %v552, %v556
        %v558 = vlaneseq
        %v559 = vshrl.u32 %v558, 7
        %v560 = vsub.s32 1, %v559
        %v561 = vrot.slane %v552, %v560
        %vm564 = vcmask 523264
        %v566 = vsel %vm564, %v438, 0
        %568 = vmatprep.subr.mxu0 0.0
        %569 = vmatpush1.msra.mxu0 0.0
        %570 = vmatprep.subr.mxu0 0.0
        %571 = vmatpush1.msra.mxu0 0.0
        %572 = vmatprep.subr.mxu0 0.0
        %573 = vmatpush1.msra.mxu0 0.0
        %574 = vmatprep.subr.mxu0 0.0
        %575 = vmatpush1.msra.mxu0 0.0
        %576 = vmatprep.subr.mxu0 0.0
        %577 = vmatpush1.msra.mxu0 0.0
        %578 = vmatprep.subr.mxu0 0.0
        %579 = vmatpush1.msra.mxu0 0.0
        %580 = vmatprep.subr.mxu0 0.0
        %581 = vmatpush1.msra.mxu0 0.0
        %582 = vmatprep.subr.mxu0 0.0
        %583 = vmatpush1.msra.mxu0 0.0
        %584 = vmatprep.subr.mxu0 %v550
        %585 = vmatpush1.msra.mxu0 %v549
        %586 = vmatprep.subr.mxu0 %v548
        %587 = vmatpush1.msra.mxu0 %v547
        %588 = vmatprep.subr.mxu0 %v546
        %589 = vmatpush1.msra.mxu0 %v545
        %590 = vmatprep.subr.mxu0 %v544
        %591 = vmatpush1.msra.mxu0 %v543
        %592 = vmatprep.subr.mxu0 %v542
        %593 = vmatpush1.msra.mxu0 %v541
        %594 = vmatprep.subr.mxu0 %v540
        %595 = vmatpush1.msra.mxu0 %v539
        %596 = vmatprep.subr.mxu0 %v538
        %597 = vmatpush1.msra.mxu0 %v537
        %598 = vmatprep.subr.mxu0 %v536
        %599 = vmatpush1.msra.mxu0 %v535
        %600 = vmatprep.subr.mxu0 0.0
        %601 = vmatpush2.msra.mxu0 0.0
        %602 = vmatprep.subr.mxu0 0.0
        %603 = vmatpush2.msra.mxu0 0.0
        %604 = vmatprep.subr.mxu0 0.0
        %605 = vmatpush2.msra.mxu0 0.0
        %606 = vmatprep.subr.mxu0 0.0
        %607 = vmatpush2.msra.mxu0 0.0
        %608 = vmatprep.subr.mxu0 0.0
        %609 = vmatpush2.msra.mxu0 0.0
        %610 = vmatprep.subr.mxu0 0.0
        %611 = vmatpush2.msra.mxu0 0.0
        %612 = vmatprep.subr.mxu0 0.0
        %613 = vmatpush2.msra.mxu0 0.0
        %614 = vmatprep.subr.mxu0 0.0
        %615 = vmatpush2.msra.mxu0 0.0
        %616 = vmatprep.subr.mxu0 0.0
        %617 = vmatpush2.msra.mxu0 0.0
        %618 = vmatprep.subr.mxu0 0.0
        %619 = vmatpush2.msra.mxu0 0.0
        %620 = vmatprep.subr.mxu0 0.0
        %621 = vmatpush2.msra.mxu0 0.0
        %622 = vmatprep.subr.mxu0 0.0
        %623 = vmatpush2.msra.mxu0 0.0
        %624 = vmatprep.subr.mxu0 0.0
        %625 = vmatpush2.msra.mxu0 0.0
        %626 = vmatprep.subr.mxu0 0.0
        %627 = vmatpush2.msra.mxu0 0.0
        %628 = vmatprep.subr.mxu0 0.0
        %629 = vmatpush2.msra.mxu0 0.0
        %630 = vmatprep.subr.mxu0 0.0
        %631 = vmatpush2.msra.mxu0 0.0
        %632 = vmatprep.mubr.f32.mxu0 0.0
        %633 = vmatmul.mubr.f32.gmra.mxu0 %v566
        %v634 = vpop.f32.mrf.mxu0
        %v635 = vadd.f32 %v557, %v634
        %v636 = vpop.f32.mrf.mxu0
        %v637 = vadd.f32 %v561, %v636
        %638 = vdwg.mxu0
        %v639 = vadd.f32 %v531, %v635
        %v640 = vxor.u32 %v639, 2147483648
        %v641 = vmul.f32 %v640, 1.442695
        %v642 = vpow.pop %v641
        %v643 = vadd.f32 %v642, 1.0
        %v644 = vrcp.pop %v643
        %v645 = vmul.f32 1.0, %v644
        %v646 = vmul.f32 %v645, %v637
        %v647 = vadd.f32 %v533, %v646
        %v648 = vtanh.pop %v647
        %v649 = vsub.f32 1.0, %v645
        %651 = vrot.lane.b32.xlu0 %v648, 64
        %v652 = vpop.permute.xlu0 %651
        %v654 = vmul.f32 %v649, %v652
        %655 = vrot.lane.b32.xlu0 %v438, 64
        %v656 = vpop.permute.xlu0 %655
        %v658 = vmul.f32 %v645, %v656
        %v659 = vadd.f32 %v654, %v658
        %661 = vrot.lane.b32.xlu0 %v659, 64
        %v662 = vpop.permute.xlu0 %661
        %664 = vst.msk [vmem:[#allocation2] sm:$0xff] %vm564, %v662
        %s665 = scalar_lea.vmem [#allocation2], 8
        %v666 = vld [vmem:[%s665] sm:$0xff]
        %v667 = vld [vmem:[#allocation9 + $0xe0] sm:$0xff]
        %v668 = vld [vmem:[#allocation9 + $0xe8] sm:$0xff]
        %v669 = vld [vmem:[#allocation9 + $0xf0] sm:$0xff]
        %v670 = vld [vmem:[#allocation9 + $0xf8] sm:$0xff]
        %v671 = vld [vmem:[#allocation9 + $0x100] sm:$0xff]
        %v672 = vld [vmem:[#allocation9 + $0x108] sm:$0xff]
        %v673 = vld [vmem:[#allocation9 + $0x110] sm:$0xff]
        %v674 = vld [vmem:[#allocation9 + $0x118] sm:$0xff]
        %v675 = vld [vmem:[#allocation9 + $0x120] sm:$0xff]
        %v676 = vld [vmem:[#allocation9 + $0x128] sm:$0xff]
        %v677 = vld [vmem:[#allocation9 + $0x130] sm:$0xff]
        %v678 = vld [vmem:[#allocation9 + $0x138] sm:$0xff]
        %v679 = vld [vmem:[#allocation9 + $0x140] sm:$0xff]
        %v680 = vld [vmem:[#allocation9 + $0x148] sm:$0xff]
        %v681 = vld [vmem:[#allocation9 + $0x150] sm:$0xff]
        %v682 = vld [vmem:[#allocation9 + $0x158] sm:$0xff]
        %s683 = scalar_lea.vmem [#allocation10], 3
        %v684 = vld [vmem:[%s683] ss:$8 sm:$0x3]
        %v686 = vlaneseq
        %v687 = vshrl.u32 %v686, 7
        %v688 = vsub.s32 0, %v687
        %v689 = vrot.slane %v684, %v688
        %v690 = vlaneseq
        %v691 = vshrl.u32 %v690, 7
        %v692 = vsub.s32 1, %v691
        %v693 = vrot.slane %v684, %v692
        %v696 = vsel %vm564, %v662, 0
        %698 = vmatprep.subr.mxu0 0.0
        %699 = vmatpush1.msra.mxu0 0.0
        %700 = vmatprep.subr.mxu0 0.0
        %701 = vmatpush1.msra.mxu0 0.0
        %702 = vmatprep.subr.mxu0 0.0
        %703 = vmatpush1.msra.mxu0 0.0
        %704 = vmatprep.subr.mxu0 0.0
        %705 = vmatpush1.msra.mxu0 0.0
        %706 = vmatprep.subr.mxu0 0.0
        %707 = vmatpush1.msra.mxu0 0.0
        %708 = vmatprep.subr.mxu0 0.0
        %709 = vmatpush1.msra.mxu0 0.0
        %710 = vmatprep.subr.mxu0 0.0
        %711 = vmatpush1.msra.mxu0 0.0
        %712 = vmatprep.subr.mxu0 0.0
        %713 = vmatpush1.msra.mxu0 0.0
        %714 = vmatprep.subr.mxu0 %v682
        %715 = vmatpush1.msra.mxu0 %v681
        %716 = vmatprep.subr.mxu0 %v680
        %717 = vmatpush1.msra.mxu0 %v679
        %718 = vmatprep.subr.mxu0 %v678
        %719 = vmatpush1.msra.mxu0 %v677
        %720 = vmatprep.subr.mxu0 %v676
        %721 = vmatpush1.msra.mxu0 %v675
        %722 = vmatprep.subr.mxu0 %v674
        %723 = vmatpush1.msra.mxu0 %v673
        %724 = vmatprep.subr.mxu0 %v672
        %725 = vmatpush1.msra.mxu0 %v671
        %726 = vmatprep.subr.mxu0 %v670
        %727 = vmatpush1.msra.mxu0 %v669
        %728 = vmatprep.subr.mxu0 %v668
        %729 = vmatpush1.msra.mxu0 %v667
        %730 = vmatprep.subr.mxu0 0.0
        %731 = vmatpush2.msra.mxu0 0.0
        %732 = vmatprep.subr.mxu0 0.0
        %733 = vmatpush2.msra.mxu0 0.0
        %734 = vmatprep.subr.mxu0 0.0
        %735 = vmatpush2.msra.mxu0 0.0
        %736 = vmatprep.subr.mxu0 0.0
        %737 = vmatpush2.msra.mxu0 0.0
        %738 = vmatprep.subr.mxu0 0.0
        %739 = vmatpush2.msra.mxu0 0.0
        %740 = vmatprep.subr.mxu0 0.0
        %741 = vmatpush2.msra.mxu0 0.0
        %742 = vmatprep.subr.mxu0 0.0
        %743 = vmatpush2.msra.mxu0 0.0
        %744 = vmatprep.subr.mxu0 0.0
        %745 = vmatpush2.msra.mxu0 0.0
        %746 = vmatprep.subr.mxu0 0.0
        %747 = vmatpush2.msra.mxu0 0.0
        %748 = vmatprep.subr.mxu0 0.0
        %749 = vmatpush2.msra.mxu0 0.0
        %750 = vmatprep.subr.mxu0 0.0
        %751 = vmatpush2.msra.mxu0 0.0
        %752 = vmatprep.subr.mxu0 0.0
        %753 = vmatpush2.msra.mxu0 0.0
        %754 = vmatprep.subr.mxu0 0.0
        %755 = vmatpush2.msra.mxu0 0.0
        %756 = vmatprep.subr.mxu0 0.0
        %757 = vmatpush2.msra.mxu0 0.0
        %758 = vmatprep.subr.mxu0 0.0
        %759 = vmatpush2.msra.mxu0 0.0
        %760 = vmatprep.subr.mxu0 0.0
        %761 = vmatpush2.msra.mxu0 0.0
        %762 = vmatprep.mubr.f32.mxu0 0.0
        %763 = vmatmul.mubr.f32.gmra.mxu0 %v696
        %v764 = vpop.f32.mrf.mxu0
        %v765 = vadd.f32 %v689, %v764
        %v766 = vpop.f32.mrf.mxu0
        %v767 = vadd.f32 %v693, %v766
        %768 = vdwg.mxu0
        %v769 = vld [vmem:[#allocation9 + $0x160] sm:$0xff]
        %v770 = vld [vmem:[#allocation9 + $0x168] sm:$0xff]
        %v771 = vld [vmem:[#allocation9 + $0x170] sm:$0xff]
        %v772 = vld [vmem:[#allocation9 + $0x178] sm:$0xff]
        %v773 = vld [vmem:[#allocation9 + $0x180] sm:$0xff]
        %v774 = vld [vmem:[#allocation9 + $0x188] sm:$0xff]
        %v775 = vld [vmem:[#allocation9 + $0x190] sm:$0xff]
        %v776 = vld [vmem:[#allocation9 + $0x198] sm:$0xff]
        %v777 = vld [vmem:[#allocation9 + $0x1a0] sm:$0xff]
        %v778 = vld [vmem:[#allocation9 + $0x1a8] sm:$0xff]
        %v779 = vld [vmem:[#allocation9 + $0x1b0] sm:$0xff]
        %v780 = vld [vmem:[#allocation9 + $0x1b8] sm:$0xff]
        %v781 = vld [vmem:[#allocation9 + $0x1c0] sm:$0xff]
        %v782 = vld [vmem:[#allocation9 + $0x1c8] sm:$0xff]
        %v783 = vld [vmem:[#allocation9 + $0x1d0] sm:$0xff]
        %v784 = vld [vmem:[#allocation9 + $0x1d8] sm:$0xff]
        %s785 = scalar_lea.vmem [#allocation10], 4
        %v786 = vld [vmem:[%s785] ss:$8 sm:$0x3]
        %v788 = vlaneseq
        %v789 = vshrl.u32 %v788, 7
        %v790 = vsub.s32 0, %v789
        %v791 = vrot.slane %v786, %v790
        %v792 = vlaneseq
        %v793 = vshrl.u32 %v792, 7
        %v794 = vsub.s32 1, %v793
        %v795 = vrot.slane %v786, %v794
        %v799 = vsel %vm564, %v666, 0
        %801 = vmatprep.subr.mxu0 0.0
        %802 = vmatpush1.msra.mxu0 0.0
        %803 = vmatprep.subr.mxu0 0.0
        %804 = vmatpush1.msra.mxu0 0.0
        %805 = vmatprep.subr.mxu0 0.0
        %806 = vmatpush1.msra.mxu0 0.0
        %807 = vmatprep.subr.mxu0 0.0
        %808 = vmatpush1.msra.mxu0 0.0
        %809 = vmatprep.subr.mxu0 0.0
        %810 = vmatpush1.msra.mxu0 0.0
        %811 = vmatprep.subr.mxu0 0.0
        %812 = vmatpush1.msra.mxu0 0.0
        %813 = vmatprep.subr.mxu0 0.0
        %814 = vmatpush1.msra.mxu0 0.0
        %815 = vmatprep.subr.mxu0 0.0
        %816 = vmatpush1.msra.mxu0 0.0
        %817 = vmatprep.subr.mxu0 %v784
        %818 = vmatpush1.msra.mxu0 %v783
        %819 = vmatprep.subr.mxu0 %v782
        %820 = vmatpush1.msra.mxu0 %v781
        %821 = vmatprep.subr.mxu0 %v780
        %822 = vmatpush1.msra.mxu0 %v779
        %823 = vmatprep.subr.mxu0 %v778
        %824 = vmatpush1.msra.mxu0 %v777
        %825 = vmatprep.subr.mxu0 %v776
        %826 = vmatpush1.msra.mxu0 %v775
        %827 = vmatprep.subr.mxu0 %v774
        %828 = vmatpush1.msra.mxu0 %v773
        %829 = vmatprep.subr.mxu0 %v772
        %830 = vmatpush1.msra.mxu0 %v771
        %831 = vmatprep.subr.mxu0 %v770
        %832 = vmatpush1.msra.mxu0 %v769
        %833 = vmatprep.subr.mxu0 0.0
        %834 = vmatpush2.msra.mxu0 0.0
        %835 = vmatprep.subr.mxu0 0.0
        %836 = vmatpush2.msra.mxu0 0.0
        %837 = vmatprep.subr.mxu0 0.0
        %838 = vmatpush2.msra.mxu0 0.0
        %839 = vmatprep.subr.mxu0 0.0
        %840 = vmatpush2.msra.mxu0 0.0
        %841 = vmatprep.subr.mxu0 0.0
        %842 = vmatpush2.msra.mxu0 0.0
        %843 = vmatprep.subr.mxu0 0.0
        %844 = vmatpush2.msra.mxu0 0.0
        %845 = vmatprep.subr.mxu0 0.0
        %846 = vmatpush2.msra.mxu0 0.0
        %847 = vmatprep.subr.mxu0 0.0
        %848 = vmatpush2.msra.mxu0 0.0
        %849 = vmatprep.subr.mxu0 0.0
        %850 = vmatpush2.msra.mxu0 0.0
        %851 = vmatprep.subr.mxu0 0.0
        %852 = vmatpush2.msra.mxu0 0.0
        %853 = vmatprep.subr.mxu0 0.0
        %854 = vmatpush2.msra.mxu0 0.0
        %855 = vmatprep.subr.mxu0 0.0
        %856 = vmatpush2.msra.mxu0 0.0
        %857 = vmatprep.subr.mxu0 0.0
        %858 = vmatpush2.msra.mxu0 0.0
        %859 = vmatprep.subr.mxu0 0.0
        %860 = vmatpush2.msra.mxu0 0.0
        %861 = vmatprep.subr.mxu0 0.0
        %862 = vmatpush2.msra.mxu0 0.0
        %863 = vmatprep.subr.mxu0 0.0
        %864 = vmatpush2.msra.mxu0 0.0
        %865 = vmatprep.mubr.f32.mxu0 0.0
        %866 = vmatmul.mubr.f32.gmra.mxu0 %v799
        %v867 = vpop.f32.mrf.mxu0
        %v868 = vadd.f32 %v791, %v867
        %v869 = vpop.f32.mrf.mxu0
        %v870 = vadd.f32 %v795, %v869
        %871 = vdwg.mxu0
        %v872 = vadd.f32 %v765, %v868
        %v873 = vxor.u32 %v872, 2147483648
        %v874 = vmul.f32 %v873, 1.442695
        %v875 = vpow.pop %v874
        %v876 = vadd.f32 %v875, 1.0
        %v877 = vrcp.pop %v876
        %v878 = vmul.f32 1.0, %v877
        %v879 = vmul.f32 %v878, %v870
        %v880 = vadd.f32 %v767, %v879
        %v881 = vtanh.pop %v880
        %v882 = vsub.f32 1.0, %v878
        %884 = vrot.lane.b32.xlu0 %v881, 64
        %v885 = vpop.permute.xlu0 %884
        %v887 = vmul.f32 %v882, %v885
        %888 = vrot.lane.b32.xlu0 %v666, 64
        %v889 = vpop.permute.xlu0 %888
        %v891 = vmul.f32 %v878, %v889
        %v892 = vadd.f32 %v887, %v891
        %894 = vrot.lane.b32.xlu0 %v892, 64
        %v895 = vpop.permute.xlu0 %894
        %897 = vst.msk [vmem:[%s665] sm:$0xff] %vm564, %v895
        %898 = vrot.lane.b32.xlu0 %v892, 32
        %v899 = vpop.permute.xlu0 %898
        %v901 = vrot.slane %v899, 4
        %903 = vrot.lane.b32.xlu0 %v901, 64
        %v904 = vpop.permute.xlu0 %903
        %v906 = vsub.f32 %v892, %v904
        %v907 = vadd.f32 %v892, %v904
        %v908 = vsel %vm423, %v906, %v907
        %v909 = vld [vmem:[#allocation9 + $0x1e0] sm:$0xff]
        %v910 = vld [vmem:[#allocation9 + $0x1e8] sm:$0xff]
        %v911 = vld [vmem:[#allocation9 + $0x1f0] sm:$0xff]
        %v912 = vld [vmem:[#allocation9 + $0x1f8] sm:$0xff]
        %v913 = vld [vmem:[#allocation9 + $0x200] sm:$0xff]
        %v914 = vld [vmem:[#allocation9 + $0x208] sm:$0xff]
        %v915 = vld [vmem:[#allocation9 + $0x210] sm:$0xff]
        %v916 = vld [vmem:[#allocation9 + $0x218] sm:$0xff]
        %s917 = scalar_lea.vmem [#allocation10], 5
        %v918 = vld [vmem:[%s917] ss:$8 sm:$0x3]
        %v920 = vlaneseq
        %v921 = vshrl.u32 %v920, 7
        %v922 = vsub.s32 0, %v921
        %v923 = vrot.slane %v918, %v922
        %926 = vrot.lane.b32.xlu0 %v908, 64
        %v927 = vpop.permute.xlu0 %926
        %v928 = vsel %vm460, %v927, 0
        %930 = vmatprep.subr.mxu0 0.0
        %931 = vmatpush1.msra.mxu0 0.0
        %932 = vmatprep.subr.mxu0 0.0
        %933 = vmatpush1.msra.mxu0 0.0
        %934 = vmatprep.subr.mxu0 0.0
        %935 = vmatpush1.msra.mxu0 0.0
        %936 = vmatprep.subr.mxu0 0.0
        %937 = vmatpush1.msra.mxu0 0.0
        %938 = vmatprep.subr.mxu0 0.0
        %939 = vmatpush1.msra.mxu0 0.0
        %940 = vmatprep.subr.mxu0 0.0
        %941 = vmatpush1.msra.mxu0 0.0
        %942 = vmatprep.subr.mxu0 0.0
        %943 = vmatpush1.msra.mxu0 0.0
        %944 = vmatprep.subr.mxu0 0.0
        %945 = vmatpush1.msra.mxu0 0.0
        %946 = vmatprep.subr.mxu0 0.0
        %947 = vmatpush1.msra.mxu0 0.0
        %948 = vmatprep.subr.mxu0 0.0
        %949 = vmatpush1.msra.mxu0 0.0
        %950 = vmatprep.subr.mxu0 0.0
        %951 = vmatpush1.msra.mxu0 0.0
        %952 = vmatprep.subr.mxu0 0.0
        %953 = vmatpush1.msra.mxu0 0.0
        %954 = vmatprep.subr.mxu0 %v916
        %955 = vmatpush1.msra.mxu0 %v915
        %956 = vmatprep.subr.mxu0 %v914
        %957 = vmatpush1.msra.mxu0 %v913
        %958 = vmatprep.subr.mxu0 %v912
        %959 = vmatpush1.msra.mxu0 %v911
        %960 = vmatprep.subr.mxu0 %v910
        %961 = vmatpush1.msra.mxu0 %v909
        %962 = vmatprep.subr.mxu0 0.0
        %963 = vmatpush2.msra.mxu0 0.0
        %964 = vmatprep.subr.mxu0 0.0
        %965 = vmatpush2.msra.mxu0 0.0
        %966 = vmatprep.subr.mxu0 0.0
        %967 = vmatpush2.msra.mxu0 0.0
        %968 = vmatprep.subr.mxu0 0.0
        %969 = vmatpush2.msra.mxu0 0.0
        %970 = vmatprep.subr.mxu0 0.0
        %971 = vmatpush2.msra.mxu0 0.0
        %972 = vmatprep.subr.mxu0 0.0
        %973 = vmatpush2.msra.mxu0 0.0
        %974 = vmatprep.subr.mxu0 0.0
        %975 = vmatpush2.msra.mxu0 0.0
        %976 = vmatprep.subr.mxu0 0.0
        %977 = vmatpush2.msra.mxu0 0.0
        %978 = vmatprep.subr.mxu0 0.0
        %979 = vmatpush2.msra.mxu0 0.0
        %980 = vmatprep.subr.mxu0 0.0
        %981 = vmatpush2.msra.mxu0 0.0
        %982 = vmatprep.subr.mxu0 0.0
        %983 = vmatpush2.msra.mxu0 0.0
        %984 = vmatprep.subr.mxu0 0.0
        %985 = vmatpush2.msra.mxu0 0.0
        %986 = vmatprep.subr.mxu0 0.0
        %987 = vmatpush2.msra.mxu0 0.0
        %988 = vmatprep.subr.mxu0 0.0
        %989 = vmatpush2.msra.mxu0 0.0
        %990 = vmatprep.subr.mxu0 0.0
        %991 = vmatpush2.msra.mxu0 0.0
        %992 = vmatprep.subr.mxu0 0.0
        %993 = vmatpush2.msra.mxu0 0.0
        %994 = vmatprep.mubr.f32.mxu0 0.0
        %995 = vmatmul.mubr.f32.gmra.mxu0 %v928
        %v996 = vpop.f32.mrf.mxu0
        %v997 = vadd.f32 %v923, %v996
        %v998 = vpop.f32.mrf.mxu0
        %999 = vdwg.mxu0
        %1001 = vrot.lane.b32.xlu0 %v997, 112
        %v1002 = vpop.permute.xlu0 %1001
        %v1004 = vsel %vm423, %v997, %v1002
        %vm1005 = vcmp.ge.f32.partialorder %v1004, 0.0
        %v1006 = vstv %s332
        %v1007 = vmul.f32 %v1006, %v1004
        %v1008 = vsel %vm1005, %v1004, %v1007
        %v1009 = vld [vmem:[#allocation9 + $0x220] sm:$0xff]
        %v1010 = vld [vmem:[#allocation9 + $0x228] sm:$0xff]
        %v1011 = vld [vmem:[#allocation9 + $0x230] sm:$0xff]
        %v1012 = vld [vmem:[#allocation9 + $0x238] sm:$0xff]
        %s1013 = scalar_lea.vmem [#allocation10], 6
        %v1014 = vld [vmem:[%s1013] ss:$8 sm:$0x3]
        %v1016 = vlaneseq
        %v1017 = vshrl.u32 %v1016, 7
        %v1018 = vsub.s32 0, %v1017
        %v1019 = vrot.slane %v1014, %v1018
        %v1022 = vsel %vm348, %v1008, 0
        %1024 = vmatprep.subr.mxu0 0.0
        %1025 = vmatpush1.msra.mxu0 0.0
        %1026 = vmatprep.subr.mxu0 0.0
        %1027 = vmatpush1.msra.mxu0 0.0
        %1028 = vmatprep.subr.mxu0 0.0
        %1029 = vmatpush1.msra.mxu0 0.0
        %1030 = vmatprep.subr.mxu0 0.0
        %1031 = vmatpush1.msra.mxu0 0.0
        %1032 = vmatprep.subr.mxu0 0.0
        %1033 = vmatpush1.msra.mxu0 0.0
        %1034 = vmatprep.subr.mxu0 0.0
        %1035 = vmatpush1.msra.mxu0 0.0
        %1036 = vmatprep.subr.mxu0 0.0
        %1037 = vmatpush1.msra.mxu0 0.0
        %1038 = vmatprep.subr.mxu0 0.0
        %1039 = vmatpush1.msra.mxu0 0.0
        %1040 = vmatprep.subr.mxu0 0.0
        %1041 = vmatpush1.msra.mxu0 0.0
        %1042 = vmatprep.subr.mxu0 0.0
        %1043 = vmatpush1.msra.mxu0 0.0
        %1044 = vmatprep.subr.mxu0 0.0
        %1045 = vmatpush1.msra.mxu0 0.0
        %1046 = vmatprep.subr.mxu0 0.0
        %1047 = vmatpush1.msra.mxu0 0.0
        %1048 = vmatprep.subr.mxu0 0.0
        %1049 = vmatpush1.msra.mxu0 0.0
        %1050 = vmatprep.subr.mxu0 0.0
        %1051 = vmatpush1.msra.mxu0 0.0
        %1052 = vmatprep.subr.mxu0 %v1012
        %1053 = vmatpush1.msra.mxu0 %v1011
        %1054 = vmatprep.subr.mxu0 %v1010
        %1055 = vmatpush1.msra.mxu0 %v1009
        %1056 = vmatprep.subr.mxu0 0.0
        %1057 = vmatpush2.msra.mxu0 0.0
        %1058 = vmatprep.subr.mxu0 0.0
        %1059 = vmatpush2.msra.mxu0 0.0
        %1060 = vmatprep.subr.mxu0 0.0
        %1061 = vmatpush2.msra.mxu0 0.0
        %1062 = vmatprep.subr.mxu0 0.0
        %1063 = vmatpush2.msra.mxu0 0.0
        %1064 = vmatprep.subr.mxu0 0.0
        %1065 = vmatpush2.msra.mxu0 0.0
        %1066 = vmatprep.subr.mxu0 0.0
        %1067 = vmatpush2.msra.mxu0 0.0
        %1068 = vmatprep.subr.mxu0 0.0
        %1069 = vmatpush2.msra.mxu0 0.0
        %1070 = vmatprep.subr.mxu0 0.0
        %1071 = vmatpush2.msra.mxu0 0.0
        %1072 = vmatprep.subr.mxu0 0.0
        %1073 = vmatpush2.msra.mxu0 0.0
        %1074 = vmatprep.subr.mxu0 0.0
        %1075 = vmatpush2.msra.mxu0 0.0
        %1076 = vmatprep.subr.mxu0 0.0
        %1077 = vmatpush2.msra.mxu0 0.0
        %1078 = vmatprep.subr.mxu0 0.0
        %1079 = vmatpush2.msra.mxu0 0.0
        %1080 = vmatprep.subr.mxu0 0.0
        %1081 = vmatpush2.msra.mxu0 0.0
        %1082 = vmatprep.subr.mxu0 0.0
        %1083 = vmatpush2.msra.mxu0 0.0
        %1084 = vmatprep.subr.mxu0 0.0
        %1085 = vmatpush2.msra.mxu0 0.0
        %1086 = vmatprep.subr.mxu0 0.0
        %1087 = vmatpush2.msra.mxu0 0.0
        %1088 = vmatprep.mubr.f32.mxu0 0.0
        %1089 = vmatmul.mubr.f32.gmra.mxu0 %v1022
        %v1090 = vpop.f32.mrf.mxu0
        %v1091 = vadd.f32 %v1019, %v1090
        %v1092 = vpop.f32.mrf.mxu0
        %1093 = vdwg.mxu0
        %1094 = vst [vmem:[%s319] sm:$0xff] %v1091
        %p1095 = scmp.eq.s32.totalorder %s28, 7
        // Predicated region
        $region65: #{tpu_custom_call.1} parent=39 // pred_check
          %p1096 = pneg %p1095
        $region66: #{tpu_custom_call.1} parent=39 // pred_check_branch
          %1098 = sbr.rel (%p1096) target = $region68
        $region67: #{tpu_custom_call.1} parent=39 // pred_region
          %v1099 = vld [vmem:[#allocation2] sm:$0xff]
          %v1100 = vld [vmem:[#allocation2 + $0x8] sm:$0xff]
          %1101 = vst.msk [vmem:[#allocation14] sm:$0xff] %vm564, %v1099
          %1102 = vst.msk [vmem:[#allocation14 + $0x8] sm:$0xff] %vm564, %v1100
        $region68: #{tpu_custom_call.1} parent=39 // pred_fallthru
          _
        %s1103 = sand.u32 %s146, 1
        %s1104 = scalar_lea.sflag [#allocation5], %s1103
        %s1105 = sand.u32 %s146, 1
        %s1106 = smul.addr %s1105, 8
        %s1107 = scalar_lea.vmem [#allocation13], %s1106
        // Predicated region
        $region69: #{tpu_custom_call.1} parent=39 // pred_check
          %p1108 = pneg %p156
        $region70: #{tpu_custom_call.1} parent=39 // pred_check_branch
          %1110 = sbr.rel (%p1108) target = $region72
        $region71: #{tpu_custom_call.1} parent=39 // pred_region
          %s1112 = ssub.s32 128, 128
          %1113 = vsyncadd %s1104, %s1112
          %s1114 = smul.addr %s28, 128
          %s1115 = scalar_lea.hbm %s5, %s1114
          %s1117 = sshll.u32 %s1107, 4
          %s1118 = int_to_ptr.vmem [resolvable:$true] %s1117
          %1120 = dma.vmem_to_hbm [thread:$0]  %s1118, 128, %s1115, %s1104
        $region72: #{tpu_custom_call.1} parent=39 // pred_fallthru
          _
        // Predicated region
        $region73: #{tpu_custom_call.1} parent=39 // pred_check
          %p1121 = pneg %p177
        $region74: #{tpu_custom_call.1} parent=39 // pred_check_branch
          %1123 = sbr.rel (%p1121) target = $region76
        $region75: #{tpu_custom_call.1} parent=39 // pred_region
          %s1125 = ssub.s32 256, 256
          %1126 = vsyncadd [#allocation15], %s1125
          %s1127 = sshll.u32 [#allocation14], 4
          %s1128 = int_to_ptr.vmem [resolvable:$true] %s1127
          %1133 = dma.vmem_to_hbm [thread:$0]  %s1128, 256, %s6, [#allocation15], 128, 128, 8
        $region76: #{tpu_custom_call.1} parent=39 // pred_fallthru
          _
        // Predicated region
        $region77: #{tpu_custom_call.1} parent=39 // pred_check
          %p1134 = pneg %p177
        $region78: #{tpu_custom_call.1} parent=39 // pred_check_branch
          %1136 = sbr.rel (%p1134) target = $region80
        $region79: #{tpu_custom_call.1} parent=39 // pred_region
          %1137 = dma.done [#allocation15], 256
        $region80: #{tpu_custom_call.1} parent=39 // pred_fallthru
          _
      $region40: #{tpu_custom_call.1} parent=5 // pred_fallthru
        _
      %p1138 = scmp.le.s32.totalorder 2, %s23
      // Predicated region
      $region81: #{tpu_custom_call.1} parent=5 // pred_check
        %p1139 = pneg %p1138
      $region82: #{tpu_custom_call.1} parent=5 // pred_check_branch
        %1141 = sbr.rel (%p1139) target = $region84
      $region83: #{tpu_custom_call.1} parent=5 // pred_region
        %s1142 = ssub.s32 %s23, 2
        // Predicated region
        $region85: #{tpu_custom_call.1} parent=83 // pred_check
          %p1143 = pneg %p162
        $region86: #{tpu_custom_call.1} parent=83 // pred_check_branch
          %1145 = sbr.rel (%p1143) target = $region88
        $region87: #{tpu_custom_call.1} parent=83 // pred_region
          %s1146 = sand.u32 %s147, 1
          %s1147 = scalar_lea.sflag [#allocation5], %s1146
          %s1148 = sand.u32 %s147, 1
          %s1149 = smul.addr %s1148, 8
          %s1150 = scalar_lea.vmem [#allocation13], %s1149
          %1151 = dma.done %s1147, 128
        $region88: #{tpu_custom_call.1} parent=83 // pred_fallthru
          _
      $region84: #{tpu_custom_call.1} parent=5 // pred_fallthru
        _
    $region6: #{tpu_custom_call.1} parent=1 // loop_footer
      %s27 = sadd.s32 1, %s23
    $region7: #{tpu_custom_call.1} parent=1 // loop_footer_branch
      %22 = sbr.rel target = $region3
    $region8: #{tpu_custom_call.1} parent=1 // loop_exit
      _
    %1152 = vsyncpa [#allocation4], 1
    %s1153 = scalar_lea.sflag [#allocation4], 1
    %1154 = vsyncpa %s1153, 1
    %1155 = vsyncpa [#allocation8], 1
    %1156 = vsyncpa [#allocation11], 1
    %1157 = vsyncpa [#allocation5], 1
    %s1158 = scalar_lea.sflag [#allocation5], 1
    %1159 = vsyncpa %s1158, 1
    %1160 = vsyncpa [#allocation15], 1
    %1161 = vsyncpa [#allocation6], 1
    %s1162 = scalar_lea.sflag [#allocation6], 1
    %1163 = vsyncpa %s1162, 1

</llo_original>
